<compile_context>
chip_gen: v7x
topology: tpu7x:2x2x1
jax: 0.10.0
libtpu: 0.0.40
codegen_flags: <defaults>
</compile_context>

<pallas_src>
import functools

import jax
import jax.numpy as jnp
from jax.experimental import pallas as pl
from jax.experimental.pallas import tpu as pltpu

HIDDEN = 768  # hard-coded in ASEModel (BartClassificationHead(768, 768, 1, 0.1))


# ----------------------------------------------------------------------------
# Fused kernel: EOS gather + classification head + ranking/gen losses
# ----------------------------------------------------------------------------
def fused_kernel(eos_ref,        # SMEM (N,)  int32   EOS position per (candidate, batch) row
                 hid_hbm,        # ANY  (N, S, H) f32 encoder_last_hidden_state (stays in HBM)
                 w1_hbm,         # ANY  (H, H) bf16   dense weight (stays in HBM, manual DMA)
                 b1_ref,         # VMEM (1, H) f32    dense bias
                 w2_ref,         # VMEM (1, H) f32    out_proj weight (lane-dense row)
                 b2_ref,         # SMEM (1,)   f32    out_proj bias
                 mask_ref,       # VMEM (B, C-1) f32  loss_mask (original layout)
                 gen_ref,        # SMEM (C*3,) f32    per-candidate (fq, cd, sq) gen losses
                 lw_ref,         # SMEM (4,)   f32    loss_weights
                 scores_ref,     # VMEM out (B, C)
                 gen_out_ref,    # VMEM out (1, 1)
                 rank_out_ref,   # VMEM out (1, 1)
                 *scratch,
                 C, B, bulk_gather):
    N = C * B

    if bulk_gather:
        hid_vmem, w1_vmem, slab_ref, sems = scratch
    else:
        w1_vmem, slab_ref, sems = scratch

    # ---- 1) EOS gather + w1 bulk load, overlapped ----------------------------
    if bulk_gather:
        # Small-S path: one streaming copy of the whole hidden block (no per-row
        # descriptor latency), overlapped with the bulk w1 copy; the EOS rows are
        # then gathered with in-VMEM dynamic slices while the w1 DMA is still in
        # flight.
        hid_cp = pltpu.make_async_copy(hid_hbm, hid_vmem, sems.at[0])
        hid_cp.start()
        w1_cp = pltpu.make_async_copy(w1_hbm, w1_vmem, sems.at[1])
        w1_cp.start()
        hid_cp.wait()
        for n in range(N):
            slab_ref[pl.ds(n, 1), :] = hid_vmem[n, pl.ds(eos_ref[n], 1), :]
        w1_cp.wait()
    else:
        # Large-S path: fetch only the (1, H) EOS row of every sequence (Sx traffic
        # saving). Issue all latency-bound row descriptors first, then hide their
        # tail under the bandwidth-bound w1 copy. One shared DMA semaphore for all
        # row copies (equal sizes), all starts before any wait.
        row_cps = []
        for n in range(N):
            cp = pltpu.make_async_copy(
                hid_hbm.at[n, pl.ds(eos_ref[n], 1), :],
                slab_ref.at[pl.ds(n, 1), :],
                sems.at[0])
            cp.start()
            row_cps.append(cp)
        w1_cp = pltpu.make_async_copy(w1_hbm, w1_vmem, sems.at[1])
        w1_cp.start()
        for cp in row_cps:
            cp.wait()
        w1_cp.wait()

    # ---- 2) BartClassificationHead on the gathered slab ----------------------
    # dropout(id) -> dense (MXU, bf16 in / f32 accumulate) -> tanh -> dropout(id)
    h = jnp.tanh(
        jnp.dot(slab_ref[...].astype(jnp.bfloat16), w1_vmem[...],
                preferred_element_type=jnp.float32)
        + b1_ref[...])                                                  # (N, H) f32

    # out_proj (768 -> 1) as lane-dense VPU multiply + lane reduction (no N=1 matmul)
    s_all = jnp.sum(h * w2_ref[...], axis=-1, keepdims=True) + b2_ref[0]   # (N, 1)

    # ---- 3) scores in final (B, C) layout + vectorized hinge loss ------------
    # Row n of s_all corresponds to (candidate c = n // B, batch b = n % B); assemble
    # the (B, C) score matrix directly (cheap lane concat of (B,1) column slices).
    s_bc = jnp.concatenate([s_all[c * B:(c + 1) * B, :] for c in range(C)], axis=-1)
    scores_ref[...] = s_bc                                               # (B, C)
    d = s_bc[:, 0:1] - s_bc[:, 1:]                                       # (B, C-1)
    hinge = (jnp.sum(jnp.maximum(1.0 - d * mask_ref[...], 0.0))
             / jnp.float32(B * (C - 1)))                                 # torch.mean
    w0 = lw_ref[0]
    rank_out_ref[...] = jnp.reshape(hinge / (w0 * 2.0) + jnp.log(w0 + 1.0), (1, 1))

    # ---- 4) uncertainty-weighted generation losses (scalar path) -------------
    gw1, gw2, gw3 = lw_ref[1], lw_ref[2], lw_ref[3]
    t1 = jnp.log(gw1 + 1.0)
    t2 = jnp.log(gw2 + 1.0)
    t3 = jnp.log(gw3 + 1.0)
    gen_sum = jnp.float32(0.0)
    for c in range(C):
        gen_sum = gen_sum + (gen_ref[3 * c + 0] / (gw1 * 2.0) + t1
                             + gen_ref[3 * c + 1] / (gw2 * 2.0) + t2
                             + gen_ref[3 * c + 2] / (gw3 * 2.0) + t3)
    gen_out_ref[...] = jnp.reshape(gen_sum / jnp.float32(C), (1, 1))


def ase_forward(encoder_hidden, eos_idx, w1, b1, w2, b2, loss_mask, gen_losses,
                loss_weights):
    """Pallas path. Returns (batch_scores (B,C), gen_loss_mean, w_ranking_loss)."""
    C, B, S, H = encoder_hidden.shape
    N = C * B

    hid_flat = encoder_hidden.reshape(N, S, H)                    # metadata reshape
    # DMA OOB is unchecked on TPU: clamp EOS indices (16 ints, effectively free).
    eos_flat = jnp.clip(eos_idx.reshape(N).astype(jnp.int32), 0, S - 1)
    # Weight is fed to the MXU as bf16 (in a real model it would be stored bf16).
    w1_bf16 = w1.astype(jnp.bfloat16)
    b1_row = jnp.reshape(b1, (1, H)).astype(jnp.float32)
    w2_row = jnp.reshape(w2, (1, H)).astype(jnp.float32)          # (H,1) -> (1,H) lane-dense
    b2_s = jnp.reshape(b2, (1,)).astype(jnp.float32)
    mask = loss_mask.astype(jnp.float32)                          # (B, C-1), no transpose
    gen_flat = jnp.reshape(gen_losses, (C * 3,)).astype(jnp.float32)
    lw = jnp.reshape(loss_weights, (4,)).astype(jnp.float32)

    # Small-S: one bulk copy of the (N,S,H) block beats 16 descriptor-latency-bound
    # 3 KiB DMAs. Large-S: per-row gather saves Sx HBM traffic.
    bulk_gather = (S < 128) and (N * S * H * 4 <= (8 << 20))

    scratch_shapes = [
        pltpu.VMEM((H, H), jnp.bfloat16),      # w1 landing buffer
        pltpu.VMEM((N, H), jnp.float32),       # gathered EOS rows (slab)
        pltpu.SemaphoreType.DMA((2,)),         # [0]=gather, [1]=w1
    ]
    if bulk_gather:
        scratch_shapes = [pltpu.VMEM((N, S, H), jnp.float32)] + scratch_shapes

    # Advisory cost hint so XLA schedules neighbouring ops around this short call.
    hid_bytes = N * S * H * 4 if bulk_gather else N * H * 4
    cost = pl.CostEstimate(
        flops=2 * N * H * H + 4 * N * H,
        transcendentals=N * H,
        bytes_accessed=hid_bytes + H * H * 2 + (N + 2 * H) * 4 + B * C * 4,
    )

    # Raise the scoped VMEM limit only if the bulk slab would exceed the default.
    vmem_bytes = hid_bytes + H * H * 2 + N * H * 4 + (2 << 20)
    compiler_params = None
    if vmem_bytes > (16 << 20):
        compiler_params = pltpu.CompilerParams(
            vmem_limit_bytes=min(vmem_bytes + (4 << 20), 60 << 20))

    kernel = functools.partial(fused_kernel, C=C, B=B, bulk_gather=bulk_gather)
    scores_bc, gen_out, rank_out = pl.pallas_call(
        kernel,
        out_shape=(
            jax.ShapeDtypeStruct((B, C), jnp.float32),
            jax.ShapeDtypeStruct((1, 1), jnp.float32),
            jax.ShapeDtypeStruct((1, 1), jnp.float32),
        ),
        in_specs=[
            pl.BlockSpec(memory_space=pltpu.MemorySpace.SMEM),    # eos indices
            pl.BlockSpec(memory_space=pl.ANY),                    # encoder hidden (HBM)
            pl.BlockSpec(memory_space=pl.ANY),                    # w1 (HBM, manual DMA)
            pl.BlockSpec(memory_space=pltpu.MemorySpace.VMEM),    # b1
            pl.BlockSpec(memory_space=pltpu.MemorySpace.VMEM),    # w2 (row)
            pl.BlockSpec(memory_space=pltpu.MemorySpace.SMEM),    # b2
            pl.BlockSpec(memory_space=pltpu.MemorySpace.VMEM),    # loss_mask
            pl.BlockSpec(memory_space=pltpu.MemorySpace.SMEM),    # gen losses (flat)
            pl.BlockSpec(memory_space=pltpu.MemorySpace.SMEM),    # loss_weights
        ],
        out_specs=(
            pl.BlockSpec(memory_space=pltpu.MemorySpace.VMEM),
            pl.BlockSpec(memory_space=pltpu.MemorySpace.VMEM),
            pl.BlockSpec(memory_space=pltpu.MemorySpace.VMEM),
        ),
        scratch_shapes=scratch_shapes,
        cost_estimate=cost,
        compiler_params=compiler_params,
    )(eos_flat, hid_flat, w1_bf16, b1_row, w2_row, b2_s, mask, gen_flat, lw)

    # scores already in final (B, C) layout == torch.cat(scores, dim=-1); no transpose.
    return scores_bc, gen_out[0, 0], rank_out[0, 0]


# ----------------------------------------------------------------------------
# Pure-JAX f32 reference for correctness checking
# ----------------------------------------------------------------------------
def reference(encoder_hidden, eos_idx, w1, b1, w2, b2, loss_mask, gen_losses, lw):
    C, B, S, H = encoder_hidden.shape
    gathered = jnp.take_along_axis(
        encoder_hidden, eos_idx[:, :, None, None], axis=2
    )[:, :, 0, :]                                                  # (C, B, H)
    h = jnp.tanh(jnp.einsum("cbh,hk->cbk", gathered, w1) + b1[0])
    y = jnp.einsum("cbh,ho->cbo", h, w2) + b2[0]                   # (C, B, 1)
    scores = jnp.transpose(y[:, :, 0], (1, 0))                     # (B, C)
    diff = scores[:, 0:1] - scores[:, 1:]
    hinge = jnp.mean(jnp.maximum(1.0 - diff * loss_mask, 0.0))
    wl = lambda l, i: l / (lw[i] * 2.0) + jnp.log(lw[i] + 1.0)
    w_rank = wl(hinge, 0)
    gen = jnp.mean(wl(gen_losses[:, 0], 1) + wl(gen_losses[:, 1], 2)
                   + wl(gen_losses[:, 2], 3))
    return scores, gen, w_rank


if __name__ == "__main__":
    key = jax.random.PRNGKey(0)
    C, B, S, H = 4, 4, 16, HIDDEN   # C candidate-batches, B sequences each, seq len S
    k1, k2, k3, k4, k5, k6 = jax.random.split(key, 6)

    # Synthetic BART encoder_last_hidden_state (the BART backbone is not re-implemented).
    encoder_hidden = jax.random.normal(k1, (C, B, S, H), jnp.float32)
    # exactly one EOS token per sequence (position indices)
    eos_idx = jax.random.randint(k2, (C, B), 0, S)

    # Deterministic parameter init (xavier_normal_ for the two head weights, zero bias).
    w1 = jax.random.normal(k3, (H, H), jnp.float32) * (2.0 / (H + H)) ** 0.5   # dense (in,out)
    b1 = jnp.zeros((1, H), jnp.float32)
    w2 = jax.random.normal(k4, (H, 1), jnp.float32) * (2.0 / (H + 1)) ** 0.5   # out_proj (in,out)
    b2 = jnp.zeros((1, 1), jnp.float32)
    loss_weights = jnp.ones((4,), jnp.float32)                                 # nn.Parameter(ones(4))

    # TODO(synk): BART generation_forward (full seq2seq LM loss) has no compact Pallas
    # equivalent; synthetic per-batch (fq, cd, sq) scalar losses stand in for it.
    gen_losses = jax.random.uniform(k5, (C, 3), jnp.float32, minval=0.5, maxval=2.0)
    loss_mask = (jax.random.uniform(k6, (B, C - 1)) > 0.3).astype(jnp.float32)

    # --- Pallas path (single fused kernel) ---
    batch_scores, gen_total, w_rank = ase_forward(
        encoder_hidden, eos_idx, w1, b1, w2, b2, loss_mask, gen_losses, loss_weights
    )
    jax.block_until_ready((batch_scores, gen_total, w_rank))

    # --- check against pure-JAX f32 reference (looser tol: bf16 MXU inputs) ---
    ref_scores, ref_gen, ref_rank = reference(
        encoder_hidden, eos_idx, w1, b1, w2, b2, loss_mask, gen_losses, loss_weights
    )
    assert jnp.allclose(batch_scores, ref_scores, atol=5e-2, rtol=5e-2)
    assert jnp.allclose(w_rank, ref_rank, atol=5e-2, rtol=5e-2)
    assert jnp.allclose(gen_total, ref_gen, atol=1e-5, rtol=1e-5)     # pure f32 scalar path

    print("KERNEL_OK")
</pallas_src>

<mosaic_0001>
module attributes {stable_mosaic.version = 11 : i64} {
  func.func @fused_kernel(%arg0: memref<16xi32, #tpu.memory_space<smem>>, %arg1: memref<16x16x768xf32, #tpu.memory_space<any>>, %arg2: memref<768x768xbf16, #tpu.memory_space<any>>, %arg3: memref<1x768xf32, #tpu.memory_space<vmem>>, %arg4: memref<1x768xf32, #tpu.memory_space<vmem>>, %arg5: memref<1xf32, #tpu.memory_space<smem>>, %arg6: memref<4x3xf32, #tpu.memory_space<vmem>>, %arg7: memref<12xf32, #tpu.memory_space<smem>>, %arg8: memref<4xf32, #tpu.memory_space<smem>>, %arg9: memref<4x4xf32, #tpu.memory_space<vmem>>, %arg10: memref<1x1xf32, #tpu.memory_space<vmem>>, %arg11: memref<1x1xf32, #tpu.memory_space<vmem>>, %arg12: memref<16x16x768xf32, #tpu.memory_space<vmem>>, %arg13: memref<768x768xbf16, #tpu.memory_space<vmem>>, %arg14: memref<16x768xf32, #tpu.memory_space<vmem>>, %arg15: memref<2x!tpu.dma_semaphore, #tpu.memory_space<semaphore_mem>>) attributes {dimension_semantics = [], scalar_prefetch = 0 : i64, scratch_operands = 4 : i64, tpu.core_type = #tpu.core_type<tc>} {
    %c0_i32 = arith.constant 0 : i32
    %0 = tpu.memref_slice %arg15[%c0_i32] : memref<2x!tpu.dma_semaphore, #tpu.memory_space<semaphore_mem>> -> memref<1x!tpu.dma_semaphore, #tpu.memory_space<semaphore_mem>>
    %1 = tpu.memref_squeeze %0 : memref<1x!tpu.dma_semaphore, #tpu.memory_space<semaphore_mem>> -> memref<!tpu.dma_semaphore, #tpu.memory_space<semaphore_mem>>
    tpu.enqueue_dma source(%arg1 : memref<16x16x768xf32, #tpu.memory_space<any>>) target(%arg12 : memref<16x16x768xf32, #tpu.memory_space<vmem>>) target_semaphore(%1 : memref<!tpu.dma_semaphore, #tpu.memory_space<semaphore_mem>>)
    %c1_i32 = arith.constant 1 : i32
    %2 = tpu.memref_slice %arg15[%c1_i32] : memref<2x!tpu.dma_semaphore, #tpu.memory_space<semaphore_mem>> -> memref<1x!tpu.dma_semaphore, #tpu.memory_space<semaphore_mem>>
    %3 = tpu.memref_squeeze %2 : memref<1x!tpu.dma_semaphore, #tpu.memory_space<semaphore_mem>> -> memref<!tpu.dma_semaphore, #tpu.memory_space<semaphore_mem>>
    tpu.enqueue_dma source(%arg2 : memref<768x768xbf16, #tpu.memory_space<any>>) target(%arg13 : memref<768x768xbf16, #tpu.memory_space<vmem>>) target_semaphore(%3 : memref<!tpu.dma_semaphore, #tpu.memory_space<semaphore_mem>>)
    %c0_i32_0 = arith.constant 0 : i32
    %4 = tpu.memref_slice %arg15[%c0_i32_0] : memref<2x!tpu.dma_semaphore, #tpu.memory_space<semaphore_mem>> -> memref<1x!tpu.dma_semaphore, #tpu.memory_space<semaphore_mem>>
    %5 = tpu.memref_squeeze %4 : memref<1x!tpu.dma_semaphore, #tpu.memory_space<semaphore_mem>> -> memref<!tpu.dma_semaphore, #tpu.memory_space<semaphore_mem>>
    tpu.wait_dma2 semaphore(%5 : memref<!tpu.dma_semaphore, #tpu.memory_space<semaphore_mem>>) src(%arg1 : memref<16x16x768xf32, #tpu.memory_space<any>>) dst(%arg12 : memref<16x16x768xf32, #tpu.memory_space<vmem>>)
    %c0 = arith.constant 0 : index
    %6 = memref.load %arg0[%c0] : memref<16xi32, #tpu.memory_space<smem>>
    %c0_1 = arith.constant 0 : index
    %7 = arith.index_cast %6 : i32 to index
    %c0_2 = arith.constant 0 : index
    %8 = vector.load %arg12[%c0_1, %7, %c0_2] : memref<16x16x768xf32, #tpu.memory_space<vmem>>, vector<1x1x768xf32>
    %9 = vector.shape_cast %8 : vector<1x1x768xf32> to vector<1x768xf32>
    %c0_3 = arith.constant 0 : index
    %c0_4 = arith.constant 0 : index
    %10 = vector.load %arg14[%c0_3, %c0_4] : memref<16x768xf32, #tpu.memory_space<vmem>>, vector<1x768xf32>
    tpu.vector_store %arg14[%c0_3, %c0_4], %9 {strides = array<i32>} : memref<16x768xf32, #tpu.memory_space<vmem>>, vector<1x768xf32>,
    %c1 = arith.constant 1 : index
    %11 = memref.load %arg0[%c1] : memref<16xi32, #tpu.memory_space<smem>>
    %c1_5 = arith.constant 1 : index
    %12 = arith.index_cast %11 : i32 to index
    %c0_6 = arith.constant 0 : index
    %13 = vector.load %arg12[%c1_5, %12, %c0_6] : memref<16x16x768xf32, #tpu.memory_space<vmem>>, vector<1x1x768xf32>
    %14 = vector.shape_cast %13 : vector<1x1x768xf32> to vector<1x768xf32>
    %c1_7 = arith.constant 1 : index
    %c0_8 = arith.constant 0 : index
    %15 = vector.load %arg14[%c1_7, %c0_8] : memref<16x768xf32, #tpu.memory_space<vmem>>, vector<1x768xf32>
    tpu.vector_store %arg14[%c1_7, %c0_8], %14 {strides = array<i32>} : memref<16x768xf32, #tpu.memory_space<vmem>>, vector<1x768xf32>,
    %c2 = arith.constant 2 : index
    %16 = memref.load %arg0[%c2] : memref<16xi32, #tpu.memory_space<smem>>
    %c2_9 = arith.constant 2 : index
    %17 = arith.index_cast %16 : i32 to index
    %c0_10 = arith.constant 0 : index
    %18 = vector.load %arg12[%c2_9, %17, %c0_10] : memref<16x16x768xf32, #tpu.memory_space<vmem>>, vector<1x1x768xf32>
    %19 = vector.shape_cast %18 : vector<1x1x768xf32> to vector<1x768xf32>
    %c2_11 = arith.constant 2 : index
    %c0_12 = arith.constant 0 : index
    %20 = vector.load %arg14[%c2_11, %c0_12] : memref<16x768xf32, #tpu.memory_space<vmem>>, vector<1x768xf32>
    tpu.vector_store %arg14[%c2_11, %c0_12], %19 {strides = array<i32>} : memref<16x768xf32, #tpu.memory_space<vmem>>, vector<1x768xf32>,
    %c3 = arith.constant 3 : index
    %21 = memref.load %arg0[%c3] : memref<16xi32, #tpu.memory_space<smem>>
    %c3_13 = arith.constant 3 : index
    %22 = arith.index_cast %21 : i32 to index
    %c0_14 = arith.constant 0 : index
    %23 = vector.load %arg12[%c3_13, %22, %c0_14] : memref<16x16x768xf32, #tpu.memory_space<vmem>>, vector<1x1x768xf32>
    %24 = vector.shape_cast %23 : vector<1x1x768xf32> to vector<1x768xf32>
    %c3_15 = arith.constant 3 : index
    %c0_16 = arith.constant 0 : index
    %25 = vector.load %arg14[%c3_15, %c0_16] : memref<16x768xf32, #tpu.memory_space<vmem>>, vector<1x768xf32>
    tpu.vector_store %arg14[%c3_15, %c0_16], %24 {strides = array<i32>} : memref<16x768xf32, #tpu.memory_space<vmem>>, vector<1x768xf32>,
    %c4 = arith.constant 4 : index
    %26 = memref.load %arg0[%c4] : memref<16xi32, #tpu.memory_space<smem>>
    %c4_17 = arith.constant 4 : index
    %27 = arith.index_cast %26 : i32 to index
    %c0_18 = arith.constant 0 : index
    %28 = vector.load %arg12[%c4_17, %27, %c0_18] : memref<16x16x768xf32, #tpu.memory_space<vmem>>, vector<1x1x768xf32>
    %29 = vector.shape_cast %28 : vector<1x1x768xf32> to vector<1x768xf32>
    %c4_19 = arith.constant 4 : index
    %c0_20 = arith.constant 0 : index
    %30 = vector.load %arg14[%c4_19, %c0_20] : memref<16x768xf32, #tpu.memory_space<vmem>>, vector<1x768xf32>
    tpu.vector_store %arg14[%c4_19, %c0_20], %29 {strides = array<i32>} : memref<16x768xf32, #tpu.memory_space<vmem>>, vector<1x768xf32>,
    %c5 = arith.constant 5 : index
    %31 = memref.load %arg0[%c5] : memref<16xi32, #tpu.memory_space<smem>>
    %c5_21 = arith.constant 5 : index
    %32 = arith.index_cast %31 : i32 to index
    %c0_22 = arith.constant 0 : index
    %33 = vector.load %arg12[%c5_21, %32, %c0_22] : memref<16x16x768xf32, #tpu.memory_space<vmem>>, vector<1x1x768xf32>
    %34 = vector.shape_cast %33 : vector<1x1x768xf32> to vector<1x768xf32>
    %c5_23 = arith.constant 5 : index
    %c0_24 = arith.constant 0 : index
    %35 = vector.load %arg14[%c5_23, %c0_24] : memref<16x768xf32, #tpu.memory_space<vmem>>, vector<1x768xf32>
    tpu.vector_store %arg14[%c5_23, %c0_24], %34 {strides = array<i32>} : memref<16x768xf32, #tpu.memory_space<vmem>>, vector<1x768xf32>,
    %c6 = arith.constant 6 : index
    %36 = memref.load %arg0[%c6] : memref<16xi32, #tpu.memory_space<smem>>
    %c6_25 = arith.constant 6 : index
    %37 = arith.index_cast %36 : i32 to index
    %c0_26 = arith.constant 0 : index
    %38 = vector.load %arg12[%c6_25, %37, %c0_26] : memref<16x16x768xf32, #tpu.memory_space<vmem>>, vector<1x1x768xf32>
    %39 = vector.shape_cast %38 : vector<1x1x768xf32> to vector<1x768xf32>
    %c6_27 = arith.constant 6 : index
    %c0_28 = arith.constant 0 : index
    %40 = vector.load %arg14[%c6_27, %c0_28] : memref<16x768xf32, #tpu.memory_space<vmem>>, vector<1x768xf32>
    tpu.vector_store %arg14[%c6_27, %c0_28], %39 {strides = array<i32>} : memref<16x768xf32, #tpu.memory_space<vmem>>, vector<1x768xf32>,
    %c7 = arith.constant 7 : index
    %41 = memref.load %arg0[%c7] : memref<16xi32, #tpu.memory_space<smem>>
    %c7_29 = arith.constant 7 : index
    %42 = arith.index_cast %41 : i32 to index
    %c0_30 = arith.constant 0 : index
    %43 = vector.load %arg12[%c7_29, %42, %c0_30] : memref<16x16x768xf32, #tpu.memory_space<vmem>>, vector<1x1x768xf32>
    %44 = vector.shape_cast %43 : vector<1x1x768xf32> to vector<1x768xf32>
    %c7_31 = arith.constant 7 : index
    %c0_32 = arith.constant 0 : index
    %45 = vector.load %arg14[%c7_31, %c0_32] : memref<16x768xf32, #tpu.memory_space<vmem>>, vector<1x768xf32>
    tpu.vector_store %arg14[%c7_31, %c0_32], %44 {strides = array<i32>} : memref<16x768xf32, #tpu.memory_space<vmem>>, vector<1x768xf32>,
    %c8 = arith.constant 8 : index
    %46 = memref.load %arg0[%c8] : memref<16xi32, #tpu.memory_space<smem>>
    %c8_33 = arith.constant 8 : index
    %47 = arith.index_cast %46 : i32 to index
    %c0_34 = arith.constant 0 : index
    %48 = vector.load %arg12[%c8_33, %47, %c0_34] : memref<16x16x768xf32, #tpu.memory_space<vmem>>, vector<1x1x768xf32>
    %49 = vector.shape_cast %48 : vector<1x1x768xf32> to vector<1x768xf32>
    %c8_35 = arith.constant 8 : index
    %c0_36 = arith.constant 0 : index
    %50 = vector.load %arg14[%c8_35, %c0_36] : memref<16x768xf32, #tpu.memory_space<vmem>>, vector<1x768xf32>
    tpu.vector_store %arg14[%c8_35, %c0_36], %49 {strides = array<i32>} : memref<16x768xf32, #tpu.memory_space<vmem>>, vector<1x768xf32>,
    %c9 = arith.constant 9 : index
    %51 = memref.load %arg0[%c9] : memref<16xi32, #tpu.memory_space<smem>>
    %c9_37 = arith.constant 9 : index
    %52 = arith.index_cast %51 : i32 to index
    %c0_38 = arith.constant 0 : index
    %53 = vector.load %arg12[%c9_37, %52, %c0_38] : memref<16x16x768xf32, #tpu.memory_space<vmem>>, vector<1x1x768xf32>
    %54 = vector.shape_cast %53 : vector<1x1x768xf32> to vector<1x768xf32>
    %c9_39 = arith.constant 9 : index
    %c0_40 = arith.constant 0 : index
    %55 = vector.load %arg14[%c9_39, %c0_40] : memref<16x768xf32, #tpu.memory_space<vmem>>, vector<1x768xf32>
    tpu.vector_store %arg14[%c9_39, %c0_40], %54 {strides = array<i32>} : memref<16x768xf32, #tpu.memory_space<vmem>>, vector<1x768xf32>,
    %c10 = arith.constant 10 : index
    %56 = memref.load %arg0[%c10] : memref<16xi32, #tpu.memory_space<smem>>
    %c10_41 = arith.constant 10 : index
    %57 = arith.index_cast %56 : i32 to index
    %c0_42 = arith.constant 0 : index
    %58 = vector.load %arg12[%c10_41, %57, %c0_42] : memref<16x16x768xf32, #tpu.memory_space<vmem>>, vector<1x1x768xf32>
    %59 = vector.shape_cast %58 : vector<1x1x768xf32> to vector<1x768xf32>
    %c10_43 = arith.constant 10 : index
    %c0_44 = arith.constant 0 : index
    %60 = vector.load %arg14[%c10_43, %c0_44] : memref<16x768xf32, #tpu.memory_space<vmem>>, vector<1x768xf32>
    tpu.vector_store %arg14[%c10_43, %c0_44], %59 {strides = array<i32>} : memref<16x768xf32, #tpu.memory_space<vmem>>, vector<1x768xf32>,
    %c11 = arith.constant 11 : index
    %61 = memref.load %arg0[%c11] : memref<16xi32, #tpu.memory_space<smem>>
    %c11_45 = arith.constant 11 : index
    %62 = arith.index_cast %61 : i32 to index
    %c0_46 = arith.constant 0 : index
    %63 = vector.load %arg12[%c11_45, %62, %c0_46] : memref<16x16x768xf32, #tpu.memory_space<vmem>>, vector<1x1x768xf32>
    %64 = vector.shape_cast %63 : vector<1x1x768xf32> to vector<1x768xf32>
    %c11_47 = arith.constant 11 : index
    %c0_48 = arith.constant 0 : index
    %65 = vector.load %arg14[%c11_47, %c0_48] : memref<16x768xf32, #tpu.memory_space<vmem>>, vector<1x768xf32>
    tpu.vector_store %arg14[%c11_47, %c0_48], %64 {strides = array<i32>} : memref<16x768xf32, #tpu.memory_space<vmem>>, vector<1x768xf32>,
    %c12 = arith.constant 12 : index
    %66 = memref.load %arg0[%c12] : memref<16xi32, #tpu.memory_space<smem>>
    %c12_49 = arith.constant 12 : index
    %67 = arith.index_cast %66 : i32 to index
    %c0_50 = arith.constant 0 : index
    %68 = vector.load %arg12[%c12_49, %67, %c0_50] : memref<16x16x768xf32, #tpu.memory_space<vmem>>, vector<1x1x768xf32>
    %69 = vector.shape_cast %68 : vector<1x1x768xf32> to vector<1x768xf32>
    %c12_51 = arith.constant 12 : index
    %c0_52 = arith.constant 0 : index
    %70 = vector.load %arg14[%c12_51, %c0_52] : memref<16x768xf32, #tpu.memory_space<vmem>>, vector<1x768xf32>
    tpu.vector_store %arg14[%c12_51, %c0_52], %69 {strides = array<i32>} : memref<16x768xf32, #tpu.memory_space<vmem>>, vector<1x768xf32>,
    %c13 = arith.constant 13 : index
    %71 = memref.load %arg0[%c13] : memref<16xi32, #tpu.memory_space<smem>>
    %c13_53 = arith.constant 13 : index
    %72 = arith.index_cast %71 : i32 to index
    %c0_54 = arith.constant 0 : index
    %73 = vector.load %arg12[%c13_53, %72, %c0_54] : memref<16x16x768xf32, #tpu.memory_space<vmem>>, vector<1x1x768xf32>
    %74 = vector.shape_cast %73 : vector<1x1x768xf32> to vector<1x768xf32>
    %c13_55 = arith.constant 13 : index
    %c0_56 = arith.constant 0 : index
    %75 = vector.load %arg14[%c13_55, %c0_56] : memref<16x768xf32, #tpu.memory_space<vmem>>, vector<1x768xf32>
    tpu.vector_store %arg14[%c13_55, %c0_56], %74 {strides = array<i32>} : memref<16x768xf32, #tpu.memory_space<vmem>>, vector<1x768xf32>,
    %c14 = arith.constant 14 : index
    %76 = memref.load %arg0[%c14] : memref<16xi32, #tpu.memory_space<smem>>
    %c14_57 = arith.constant 14 : index
    %77 = arith.index_cast %76 : i32 to index
    %c0_58 = arith.constant 0 : index
    %78 = vector.load %arg12[%c14_57, %77, %c0_58] : memref<16x16x768xf32, #tpu.memory_space<vmem>>, vector<1x1x768xf32>
    %79 = vector.shape_cast %78 : vector<1x1x768xf32> to vector<1x768xf32>
    %c14_59 = arith.constant 14 : index
    %c0_60 = arith.constant 0 : index
    %80 = vector.load %arg14[%c14_59, %c0_60] : memref<16x768xf32, #tpu.memory_space<vmem>>, vector<1x768xf32>
    tpu.vector_store %arg14[%c14_59, %c0_60], %79 {strides = array<i32>} : memref<16x768xf32, #tpu.memory_space<vmem>>, vector<1x768xf32>,
    %c15 = arith.constant 15 : index
    %81 = memref.load %arg0[%c15] : memref<16xi32, #tpu.memory_space<smem>>
    %c15_61 = arith.constant 15 : index
    %82 = arith.index_cast %81 : i32 to index
    %c0_62 = arith.constant 0 : index
    %83 = vector.load %arg12[%c15_61, %82, %c0_62] : memref<16x16x768xf32, #tpu.memory_space<vmem>>, vector<1x1x768xf32>
    %84 = vector.shape_cast %83 : vector<1x1x768xf32> to vector<1x768xf32>
    %c15_63 = arith.constant 15 : index
    %c0_64 = arith.constant 0 : index
    %85 = vector.load %arg14[%c15_63, %c0_64] : memref<16x768xf32, #tpu.memory_space<vmem>>, vector<1x768xf32>
    tpu.vector_store %arg14[%c15_63, %c0_64], %84 {strides = array<i32>} : memref<16x768xf32, #tpu.memory_space<vmem>>, vector<1x768xf32>,
    %c1_i32_65 = arith.constant 1 : i32
    %86 = tpu.memref_slice %arg15[%c1_i32_65] : memref<2x!tpu.dma_semaphore, #tpu.memory_space<semaphore_mem>> -> memref<1x!tpu.dma_semaphore, #tpu.memory_space<semaphore_mem>>
    %87 = tpu.memref_squeeze %86 : memref<1x!tpu.dma_semaphore, #tpu.memory_space<semaphore_mem>> -> memref<!tpu.dma_semaphore, #tpu.memory_space<semaphore_mem>>
    tpu.wait_dma2 semaphore(%87 : memref<!tpu.dma_semaphore, #tpu.memory_space<semaphore_mem>>) src(%arg2 : memref<768x768xbf16, #tpu.memory_space<any>>) dst(%arg13 : memref<768x768xbf16, #tpu.memory_space<vmem>>)
    %c0_66 = arith.constant 0 : index
    %c0_67 = arith.constant 0 : index
    %88 = vector.load %arg14[%c0_66, %c0_67] : memref<16x768xf32, #tpu.memory_space<vmem>>, vector<16x768xf32>
    %89 = arith.truncf %88 : vector<16x768xf32> to vector<16x768xbf16>
    %c0_68 = arith.constant 0 : index
    %c0_69 = arith.constant 0 : index
    %90 = vector.load %arg13[%c0_68, %c0_69] : memref<768x768xbf16, #tpu.memory_space<vmem>>, vector<768x768xbf16>
    %cst = arith.constant dense<0.000000e+00> : vector<16x768xf32>
    %91 = tpu.matmul %89, %90, %cst {dimension_numbers = #tpu.dot_dimension_numbers<[1], [0], [0], [1], [0, 0, 1, 1], [], []>} : vector<16x768xbf16>, vector<768x768xbf16>, vector<16x768xf32> -> vector<16x768xf32>
    %c0_70 = arith.constant 0 : index
    %c0_71 = arith.constant 0 : index
    %92 = vector.load %arg3[%c0_70, %c0_71] : memref<1x768xf32, #tpu.memory_space<vmem>>, vector<1x768xf32>
    %93 = vector.broadcast %92 : vector<1x768xf32> to vector<16x768xf32>
    %94 = arith.addf %91, %93 : vector<16x768xf32>
    %95 = math.tanh %94 : vector<16x768xf32>
    %c0_72 = arith.constant 0 : index
    %c0_73 = arith.constant 0 : index
    %96 = vector.load %arg4[%c0_72, %c0_73] : memref<1x768xf32, #tpu.memory_space<vmem>>, vector<1x768xf32>
    %97 = vector.broadcast %96 : vector<1x768xf32> to vector<16x768xf32>
    %98 = arith.mulf %95, %97 : vector<16x768xf32>
    %cst_74 = arith.constant dense<0.000000e+00> : vector<16xf32>
    %99 = vector.multi_reduction <add>, %98, %cst_74 [1] : vector<16x768xf32> to vector<16xf32>
    %100 = vector.shape_cast %99 : vector<16xf32> to vector<16x1xf32>
    %c0_75 = arith.constant 0 : index
    %101 = memref.load %arg5[%c0_75] : memref<1xf32, #tpu.memory_space<smem>>
    %102 = vector.broadcast %101 : f32 to vector<16x1xf32>
    %103 = arith.addf %100, %102 : vector<16x1xf32>
    %104 = vector.extract_strided_slice %103 {offsets = [0, 0], sizes = [4, 1], strides = [1, 1]} : vector<16x1xf32> to vector<4x1xf32>
    %105 = vector.extract_strided_slice %103 {offsets = [4, 0], sizes = [4, 1], strides = [1, 1]} : vector<16x1xf32> to vector<4x1xf32>
    %106 = vector.extract_strided_slice %103 {offsets = [8, 0], sizes = [4, 1], strides = [1, 1]} : vector<16x1xf32> to vector<4x1xf32>
    %107 = vector.extract_strided_slice %103 {offsets = [12, 0], sizes = [4, 1], strides = [1, 1]} : vector<16x1xf32> to vector<4x1xf32>
    %108 = tpu.concatenate %104, %105, %106, %107 in 1 : vector<4x1xf32>, vector<4x1xf32>, vector<4x1xf32>, vector<4x1xf32> -> vector<4x4xf32>
    %c0_76 = arith.constant 0 : index
    %c0_77 = arith.constant 0 : index
    %109 = vector.load %arg9[%c0_76, %c0_77] : memref<4x4xf32, #tpu.memory_space<vmem>>, vector<4x4xf32>
    tpu.vector_store %arg9[%c0_76, %c0_77], %108 {strides = array<i32>} : memref<4x4xf32, #tpu.memory_space<vmem>>, vector<4x4xf32>,
    %110 = vector.extract_strided_slice %108 {offsets = [0, 0], sizes = [4, 1], strides = [1, 1]} : vector<4x4xf32> to vector<4x1xf32>
    %111 = vector.extract_strided_slice %108 {offsets = [0, 1], sizes = [4, 3], strides = [1, 1]} : vector<4x4xf32> to vector<4x3xf32>
    %112 = vector.broadcast %110 : vector<4x1xf32> to vector<4x3xf32>
    %113 = arith.subf %112, %111 : vector<4x3xf32>
    %c0_78 = arith.constant 0 : index
    %c0_79 = arith.constant 0 : index
    %114 = vector.load %arg6[%c0_78, %c0_79] : memref<4x3xf32, #tpu.memory_space<vmem>>, vector<4x3xf32>
    %115 = arith.mulf %113, %114 : vector<4x3xf32>
    %cst_80 = arith.constant 1.000000e+00 : f32
    %116 = vector.broadcast %cst_80 : f32 to vector<4x3xf32>
    %117 = arith.subf %116, %115 : vector<4x3xf32>
    %cst_81 = arith.constant 0.000000e+00 : f32
    %118 = vector.broadcast %cst_81 : f32 to vector<4x3xf32>
    %119 = arith.maximumf %117, %118 : vector<4x3xf32>
    %120 = vector.shape_cast %119 : vector<4x3xf32> to vector<1x4x3xf32>
    %cst_82 = arith.constant dense<0.000000e+00> : vector<1xf32>
    %121 = vector.multi_reduction <add>, %120, %cst_82 [1, 2] : vector<1x4x3xf32> to vector<1xf32>
    %122 = vector.shape_cast %121 : vector<1xf32> to vector<1x1x1xf32>
    %123 = vector.extract %122[0, 0, 0] : f32 from vector<1x1x1xf32>
    %cst_83 = arith.constant 1.200000e+01 : f32
    %124 = arith.divf %123, %cst_83 : f32
    %c0_84 = arith.constant 0 : index
    %125 = memref.load %arg8[%c0_84] : memref<4xf32, #tpu.memory_space<smem>>
    %cst_85 = arith.constant 2.000000e+00 : f32
    %126 = arith.mulf %125, %cst_85 : f32
    %127 = arith.divf %124, %126 : f32
    %cst_86 = arith.constant 1.000000e+00 : f32
    %128 = arith.addf %125, %cst_86 : f32
    %129 = math.log %128 : f32
    %130 = arith.addf %127, %129 : f32
    %131 = vector.broadcast %130 : f32 to vector<1x1xf32>
    %c0_87 = arith.constant 0 : index
    %c0_88 = arith.constant 0 : index
    %132 = vector.load %arg11[%c0_87, %c0_88] : memref<1x1xf32, #tpu.memory_space<vmem>>, vector<1x1xf32>
    tpu.vector_store %arg11[%c0_87, %c0_88], %131 {strides = array<i32>} : memref<1x1xf32, #tpu.memory_space<vmem>>, vector<1x1xf32>,
    %c1_89 = arith.constant 1 : index
    %133 = memref.load %arg8[%c1_89] : memref<4xf32, #tpu.memory_space<smem>>
    %c2_90 = arith.constant 2 : index
    %134 = memref.load %arg8[%c2_90] : memref<4xf32, #tpu.memory_space<smem>>
    %c3_91 = arith.constant 3 : index
    %135 = memref.load %arg8[%c3_91] : memref<4xf32, #tpu.memory_space<smem>>
    %cst_92 = arith.constant 1.000000e+00 : f32
    %136 = arith.addf %133, %cst_92 : f32
    %137 = math.log %136 : f32
    %cst_93 = arith.constant 1.000000e+00 : f32
    %138 = arith.addf %134, %cst_93 : f32
    %139 = math.log %138 : f32
    %cst_94 = arith.constant 1.000000e+00 : f32
    %140 = arith.addf %135, %cst_94 : f32
    %141 = math.log %140 : f32
    %c0_95 = arith.constant 0 : index
    %142 = memref.load %arg7[%c0_95] : memref<12xf32, #tpu.memory_space<smem>>
    %cst_96 = arith.constant 2.000000e+00 : f32
    %143 = arith.mulf %133, %cst_96 : f32
    %144 = arith.divf %142, %143 : f32
    %145 = arith.addf %144, %137 : f32
    %c1_97 = arith.constant 1 : index
    %146 = memref.load %arg7[%c1_97] : memref<12xf32, #tpu.memory_space<smem>>
    %cst_98 = arith.constant 2.000000e+00 : f32
    %147 = arith.mulf %134, %cst_98 : f32
    %148 = arith.divf %146, %147 : f32
    %149 = arith.addf %145, %148 : f32
    %150 = arith.addf %149, %139 : f32
    %c2_99 = arith.constant 2 : index
    %151 = memref.load %arg7[%c2_99] : memref<12xf32, #tpu.memory_space<smem>>
    %cst_100 = arith.constant 2.000000e+00 : f32
    %152 = arith.mulf %135, %cst_100 : f32
    %153 = arith.divf %151, %152 : f32
    %154 = arith.addf %150, %153 : f32
    %155 = arith.addf %154, %141 : f32
    %cst_101 = arith.constant 0.000000e+00 : f32
    %156 = arith.addf %cst_101, %155 : f32
    %c3_102 = arith.constant 3 : index
    %157 = memref.load %arg7[%c3_102] : memref<12xf32, #tpu.memory_space<smem>>
    %cst_103 = arith.constant 2.000000e+00 : f32
    %158 = arith.mulf %133, %cst_103 : f32
    %159 = arith.divf %157, %158 : f32
    %160 = arith.addf %159, %137 : f32
    %c4_104 = arith.constant 4 : index
    %161 = memref.load %arg7[%c4_104] : memref<12xf32, #tpu.memory_space<smem>>
    %cst_105 = arith.constant 2.000000e+00 : f32
    %162 = arith.mulf %134, %cst_105 : f32
    %163 = arith.divf %161, %162 : f32
    %164 = arith.addf %160, %163 : f32
    %165 = arith.addf %164, %139 : f32
    %c5_106 = arith.constant 5 : index
    %166 = memref.load %arg7[%c5_106] : memref<12xf32, #tpu.memory_space<smem>>
    %cst_107 = arith.constant 2.000000e+00 : f32
    %167 = arith.mulf %135, %cst_107 : f32
    %168 = arith.divf %166, %167 : f32
    %169 = arith.addf %165, %168 : f32
    %170 = arith.addf %169, %141 : f32
    %171 = arith.addf %156, %170 : f32
    %c6_108 = arith.constant 6 : index
    %172 = memref.load %arg7[%c6_108] : memref<12xf32, #tpu.memory_space<smem>>
    %cst_109 = arith.constant 2.000000e+00 : f32
    %173 = arith.mulf %133, %cst_109 : f32
    %174 = arith.divf %172, %173 : f32
    %175 = arith.addf %174, %137 : f32
    %c7_110 = arith.constant 7 : index
    %176 = memref.load %arg7[%c7_110] : memref<12xf32, #tpu.memory_space<smem>>
    %cst_111 = arith.constant 2.000000e+00 : f32
    %177 = arith.mulf %134, %cst_111 : f32
    %178 = arith.divf %176, %177 : f32
    %179 = arith.addf %175, %178 : f32
    %180 = arith.addf %179, %139 : f32
    %c8_112 = arith.constant 8 : index
    %181 = memref.load %arg7[%c8_112] : memref<12xf32, #tpu.memory_space<smem>>
    %cst_113 = arith.constant 2.000000e+00 : f32
    %182 = arith.mulf %135, %cst_113 : f32
    %183 = arith.divf %181, %182 : f32
    %184 = arith.addf %180, %183 : f32
    %185 = arith.addf %184, %141 : f32
    %186 = arith.addf %171, %185 : f32
    %c9_114 = arith.constant 9 : index
    %187 = memref.load %arg7[%c9_114] : memref<12xf32, #tpu.memory_space<smem>>
    %cst_115 = arith.constant 2.000000e+00 : f32
    %188 = arith.mulf %133, %cst_115 : f32
    %189 = arith.divf %187, %188 : f32
    %190 = arith.addf %189, %137 : f32
    %c10_116 = arith.constant 10 : index
    %191 = memref.load %arg7[%c10_116] : memref<12xf32, #tpu.memory_space<smem>>
    %cst_117 = arith.constant 2.000000e+00 : f32
    %192 = arith.mulf %134, %cst_117 : f32
    %193 = arith.divf %191, %192 : f32
    %194 = arith.addf %190, %193 : f32
    %195 = arith.addf %194, %139 : f32
    %c11_118 = arith.constant 11 : index
    %196 = memref.load %arg7[%c11_118] : memref<12xf32, #tpu.memory_space<smem>>
    %cst_119 = arith.constant 2.000000e+00 : f32
    %197 = arith.mulf %135, %cst_119 : f32
    %198 = arith.divf %196, %197 : f32
    %199 = arith.addf %195, %198 : f32
    %200 = arith.addf %199, %141 : f32
    %201 = arith.addf %186, %200 : f32
    %cst_120 = arith.constant 4.000000e+00 : f32
    %202 = arith.divf %201, %cst_120 : f32
    %203 = vector.broadcast %202 : f32 to vector<1x1xf32>
    %c0_121 = arith.constant 0 : index
    %c0_122 = arith.constant 0 : index
    %204 = vector.load %arg10[%c0_121, %c0_122] : memref<1x1xf32, #tpu.memory_space<vmem>>, vector<1x1xf32>
    tpu.vector_store %arg10[%c0_121, %c0_122], %203 {strides = array<i32>} : memref<1x1xf32, #tpu.memory_space<vmem>>, vector<1x1xf32>,
    return
  }
}

</mosaic_0001>

<llo_original>
// kernel: tpu_custom_call.1
$region0: #{tpu_custom_call.1}
  #allocation0 [shape = 'u32[]', space=smem, size = 0x4, offset = 0x4, fixed_abs, tag = 'smem constant byte address 0x4 - core index']
  #allocation1 [shape = 'u32[144,128]{1,0:T(1,128)}', space=vmem, size = 0x12000, scoped, tag = 'internal scratch']
  #allocation2 [shape = 'f32[16,16,768]{2,1,0:T(8,128)}', space=vmem, size = 0xc0000, scoped, tag = 'scratch operand']
  #allocation3 [shape = 'bf16[768,768]{1,0:T(16,128)(2,1)}', space=vmem, size = 0x120000, scoped, tag = 'scratch operand']
  #allocation4 [shape = 'f32[16,768]{1,0:T(8,128)}', space=vmem, size = 0xc000, scoped, tag = 'scratch operand']
  #allocation5 [shape = 's32[2]{0}', space=sflag, size = 0x8, scoped, tag = 'scratch operand']
  #allocation6 [shape = 'f32[1]{0:T(128)S(6)}', space=smem, size = 0x200, scoped, tag = 'scoped memory for tpu_custom_call.1']
  #allocation22 [shape = 's32[]', space=sflag, size = 0x4, offset = 0, fixed_abs, tag = 'sflag constant byte address 0x0 - dummy sync flag']
  #allocation23 [shape = 's32[]', space=sflag, size = 0x4, offset = 0, fixed_abs, tag = 'sflag constant byte address 0x0 - dummy sync flag']
  #allocation24 [shape = 'u32[]', space=smem, size = 0x4, offset = 0x44, fixed_abs, tag = 'smem constant byte address 0x44 - assertion arg 0']
  #allocation25 [shape = 'u32[]', space=smem, size = 0x4, offset = 0x48, fixed_abs, tag = 'smem constant byte address 0x48 - assertion arg 1']
  #allocation26 [shape = 's32[]', space=sflag, size = 0x4, offset = 0, fixed_abs, tag = 'sflag constant byte address 0x0 - dummy sync flag']
  %s0 = inlined_call_operand.hbm [shape: s32[16], index: 0, kind: input, shape index: {}]
  %s1 = inlined_call_operand.hbm [shape: f32[16,16,768], index: 1, kind: input, shape index: {}]
  %s2 = inlined_call_operand.hbm [shape: bf16[768,768], index: 2, kind: input, shape index: {}]
  %s3 = inlined_call_operand.hbm [shape: f32[1,768], index: 3, kind: input, shape index: {}]
  %s4 = inlined_call_operand.hbm [shape: f32[1,768], index: 4, kind: input, shape index: {}]
  %s5 = inlined_call_operand.<no memory space> [shape: f32[1], index: 5, kind: input, shape index: {}]
  %s6 = inlined_call_operand.hbm [shape: f32[4,3], index: 6, kind: input, shape index: {}]
  %s7 = inlined_call_operand.hbm [shape: f32[12], index: 7, kind: input, shape index: {}]
  %s8 = inlined_call_operand.hbm [shape: f32[4], index: 8, kind: input, shape index: {}]
  %s9 = inlined_call_operand.hbm [shape: f32[4,4], index: 9, kind: output, shape index: {0}]
  %s10 = inlined_call_operand.hbm [shape: f32[1,1], index: 10, kind: output, shape index: {1}]
  %s11 = inlined_call_operand.hbm [shape: f32[1,1], index: 11, kind: output, shape index: {2}]
  %12 = xla_tuple %s9, %s10, %s11
  %s13 = sld [smem:[#allocation0]]
  $region82: #{tpu_custom_call.1} parent=0
    _
  %s15 = ssub.s32 1, %s13
  %s16 = scalar_select 0, %s15, %s13
  %17 = sst [smem:[#allocation6]] %s5
  $region1: #{tpu_custom_call.1} parent=0
    #allocation7 [shape = 'u8[512]{0}', space=smem, size = 0x200, scoped, tag = 'input window, operand 0, single buffered']
    #allocation8 [shape = 's32[1]{0}', space=sflag, size = 0x4, scoped, tag = 'scoped memory for tpu_custom_call.1']
    #allocation9 [shape = 's32[1]{0}', space=sflag, size = 0x4, scoped, tag = 'scoped memory for tpu_custom_call.1']
    #allocation10 [shape = 's32[1]{0}', space=sflag, size = 0x4, scoped, tag = 'scoped memory for tpu_custom_call.1']
    #allocation11 [shape = 'u8[3072]{0}', space=vmem, size = 0xc00, scoped, tag = 'input window, operand 3, single buffered']
    #allocation12 [shape = 'u8[3072]{0}', space=vmem, size = 0xc00, scoped, tag = 'input window, operand 4, single buffered']
    #allocation13 [shape = 's32[1]{0}', space=sflag, size = 0x4, scoped, tag = 'scoped memory for tpu_custom_call.1']
    #allocation14 [shape = 'u8[2048]{0}', space=vmem, size = 0x800, scoped, tag = 'input window, operand 6, single buffered']
    #allocation15 [shape = 'u8[512]{0}', space=smem, size = 0x200, scoped, tag = 'input window, operand 7, single buffered']
    #allocation16 [shape = 's32[1]{0}', space=sflag, size = 0x4, scoped, tag = 'scoped memory for tpu_custom_call.1']
    #allocation17 [shape = 'u8[512]{0}', space=smem, size = 0x200, scoped, tag = 'input window, operand 8, single buffered']
    #allocation18 [shape = 'u8[2048]{0}', space=vmem, size = 0x800, scoped, tag = 'output window, operand 0, single buffered']
    #allocation19 [shape = 'u8[512]{0}', space=vmem, size = 0x400, scoped, tag = 'output window, operand 1, single buffered']
    #allocation20 [shape = 's32[1]{0}', space=sflag, size = 0x4, scoped, tag = 'scoped memory for tpu_custom_call.1']
    #allocation21 [shape = 'u8[512]{0}', space=vmem, size = 0x400, scoped, tag = 'output window, operand 2, single buffered']
    #allocation27 [shape = 'u32[9]{0}', space=smem, size = 0x24, scoped, tag = 'DMA stride descriptor']
    %18 = vsyncpa [#allocation10], 0
    %19 = vsyncpa [#allocation8], 0
    %20 = vsyncpa [#allocation13], 0
    %21 = vsyncpa [#allocation16], 0
    %22 = vsyncpa [#allocation9], 0
    %23 = vsyncpa [#allocation20], 0
    // Predicated region
    $region2: #{tpu_custom_call.1} parent=1 // pred_check
      _
    $region3: #{tpu_custom_call.1} parent=1 // pred_check_branch
      %25 = sbr.rel (0) target = $region5
    $region4: #{tpu_custom_call.1} parent=1 // pred_region
      %s27 = ssub.s32 16, 16
      %28 = vsyncadd [#allocation10], %s27
      %31 = dma.hbm_to_smem %s0, 16, [#allocation7], [#allocation10]
    $region5: #{tpu_custom_call.1} parent=1 // pred_fallthru
      _
    // Predicated region
    $region6: #{tpu_custom_call.1} parent=1 // pred_check
      _
    $region7: #{tpu_custom_call.1} parent=1 // pred_check_branch
      %33 = sbr.rel (0) target = $region9
    $region8: #{tpu_custom_call.1} parent=1 // pred_region
      %s35 = ssub.s32 96, 96
      %36 = vsyncadd [#allocation8], %s35
      %s38 = sshll.u32 [#allocation11], 4
      %s39 = int_to_ptr.vmem [resolvable:$true] %s38
      %41 = dma.hbm_to_vmem [thread:$0]  %s3, 96, %s39, [#allocation8]
    $region9: #{tpu_custom_call.1} parent=1 // pred_fallthru
      _
    // Predicated region
    $region10: #{tpu_custom_call.1} parent=1 // pred_check
      _
    $region11: #{tpu_custom_call.1} parent=1 // pred_check_branch
      %43 = sbr.rel (0) target = $region13
    $region12: #{tpu_custom_call.1} parent=1 // pred_region
      %s45 = ssub.s32 96, 96
      %46 = vsyncadd [#allocation13], %s45
      %s48 = sshll.u32 [#allocation12], 4
      %s49 = int_to_ptr.vmem [resolvable:$true] %s48
      %51 = dma.hbm_to_vmem [thread:$0]  %s4, 96, %s49, [#allocation13]
    $region13: #{tpu_custom_call.1} parent=1 // pred_fallthru
      _
    // Predicated region
    $region14: #{tpu_custom_call.1} parent=1 // pred_check
      _
    $region15: #{tpu_custom_call.1} parent=1 // pred_check_branch
      %53 = sbr.rel (0) target = $region17
    $region16: #{tpu_custom_call.1} parent=1 // pred_region
      _
    $region17: #{tpu_custom_call.1} parent=1 // pred_fallthru
      _
    // Predicated region
    $region18: #{tpu_custom_call.1} parent=1 // pred_check
      _
    $region19: #{tpu_custom_call.1} parent=1 // pred_check_branch
      %55 = sbr.rel (0) target = $region21
    $region20: #{tpu_custom_call.1} parent=1 // pred_region
      %s57 = ssub.s32 64, 64
      %58 = vsyncadd [#allocation13], %s57
      %s60 = sshll.u32 [#allocation14], 4
      %s61 = int_to_ptr.vmem [resolvable:$true] %s60
      %63 = dma.hbm_to_vmem [thread:$0]  %s6, 64, %s61, [#allocation13]
    $region21: #{tpu_custom_call.1} parent=1 // pred_fallthru
      _
    // Predicated region
    $region22: #{tpu_custom_call.1} parent=1 // pred_check
      _
    $region23: #{tpu_custom_call.1} parent=1 // pred_check_branch
      %65 = sbr.rel (0) target = $region25
    $region24: #{tpu_custom_call.1} parent=1 // pred_region
      %s67 = ssub.s32 16, 16
      %68 = vsyncadd [#allocation16], %s67
      %71 = dma.hbm_to_smem %s7, 16, [#allocation15], [#allocation16]
    $region25: #{tpu_custom_call.1} parent=1 // pred_fallthru
      _
    // Predicated region
    $region26: #{tpu_custom_call.1} parent=1 // pred_check
      _
    $region27: #{tpu_custom_call.1} parent=1 // pred_check_branch
      %73 = sbr.rel (0) target = $region29
    $region28: #{tpu_custom_call.1} parent=1 // pred_region
      %s75 = ssub.s32 16, 16
      %76 = vsyncadd [#allocation16], %s75
      %79 = dma.hbm_to_smem %s8, 16, [#allocation17], [#allocation16]
    $region29: #{tpu_custom_call.1} parent=1 // pred_fallthru
      _
    // Predicated region
    $region30: #{tpu_custom_call.1} parent=1 // pred_check
      _
    $region31: #{tpu_custom_call.1} parent=1 // pred_check_branch
      %81 = sbr.rel (0) target = $region33
    $region32: #{tpu_custom_call.1} parent=1 // pred_region
      %82 = dma.done [#allocation10], 16
    $region33: #{tpu_custom_call.1} parent=1 // pred_fallthru
      _
    // Predicated region
    $region34: #{tpu_custom_call.1} parent=1 // pred_check
      _
    $region35: #{tpu_custom_call.1} parent=1 // pred_check_branch
      %84 = sbr.rel (0) target = $region37
    $region36: #{tpu_custom_call.1} parent=1 // pred_region
      %85 = dma.done [#allocation8], 96
    $region37: #{tpu_custom_call.1} parent=1 // pred_fallthru
      _
    // Predicated region
    $region38: #{tpu_custom_call.1} parent=1 // pred_check
      _
    $region39: #{tpu_custom_call.1} parent=1 // pred_check_branch
      %87 = sbr.rel (0) target = $region41
    $region40: #{tpu_custom_call.1} parent=1 // pred_region
      %88 = dma.done [#allocation13], 96
    $region41: #{tpu_custom_call.1} parent=1 // pred_fallthru
      _
    // Predicated region
    $region42: #{tpu_custom_call.1} parent=1 // pred_check
      _
    $region43: #{tpu_custom_call.1} parent=1 // pred_check_branch
      %90 = sbr.rel (0) target = $region45
    $region44: #{tpu_custom_call.1} parent=1 // pred_region
      %91 = dma.done [#allocation13], 64
    $region45: #{tpu_custom_call.1} parent=1 // pred_fallthru
      _
    // Predicated region
    $region46: #{tpu_custom_call.1} parent=1 // pred_check
      _
    $region47: #{tpu_custom_call.1} parent=1 // pred_check_branch
      %93 = sbr.rel (0) target = $region49
    $region48: #{tpu_custom_call.1} parent=1 // pred_region
      %94 = dma.done [#allocation16], 16
    $region49: #{tpu_custom_call.1} parent=1 // pred_fallthru
      _
    // Predicated region
    $region50: #{tpu_custom_call.1} parent=1 // pred_check
      _
    $region51: #{tpu_custom_call.1} parent=1 // pred_check_branch
      %96 = sbr.rel (0) target = $region53
    $region52: #{tpu_custom_call.1} parent=1 // pred_region
      %97 = dma.done [#allocation16], 16
    $region53: #{tpu_custom_call.1} parent=1 // pred_fallthru
      _
    %98 = sfence
    // Predicated region
    $region54: #{tpu_custom_call.1} parent=1 // pred_check
      _
    $region55: #{tpu_custom_call.1} parent=1 // pred_check_branch
      %100 = sbr.rel target = $region57
    $region56: #{tpu_custom_call.1} parent=1 // pred_region
      %101 = sst [smem:[#allocation24]] [#allocation23]
      %102 = sst [smem:[#allocation25]] [#allocation22]
    $region57: #{tpu_custom_call.1} parent=1 // pred_fallthru
      _
    %104 = shalt.err (0)
    %s106 = sshll.u32 [#allocation2], 4
    %s107 = int_to_ptr.vmem [resolvable:$true] %s106
    %109 = dma.hbm_to_vmem [thread:$0]  %s1, 24576, %s107, [#allocation5]
    %s110 = scalar_lea.sflag [#allocation5], 1
    %s112 = sshll.u32 1, 14
    %s113 = sxor.u32 4294967295, %s112
    %s115 = sld [smem:[#allocation0]]
    %s116 = sadd.s32 2, %s115
    %s118 = sshll.u32 7, 26
    %s119 = sxor.u32 4294967295, %s118
    %s120 = sand.u32 0, %s119
    %s121 = sshll.u32 %s116, 26
    %s122 = sor.u32 %s120, %s121
    %s123 = sshll.u32 [#allocation3], 4
    %s124 = int_to_ptr.vmem [resolvable:$true] %s123
    %127 = sst [smem:[#allocation27]] 768
    %s128 = scalar_lea.smem [#allocation27], 1
    %129 = sst [smem:[%s128]] 768
    %s130 = scalar_lea.smem [#allocation27], 2
    %131 = sst [smem:[%s130]] 6
    %s132 = scalar_lea.smem [#allocation27], 3
    %133 = sst [smem:[%s132]] 64
    %s134 = scalar_lea.smem [#allocation27], 4
    %135 = sst [smem:[%s134]] 128
    %s136 = scalar_lea.smem [#allocation27], 5
    %137 = sst [smem:[%s136]] 2
    %s138 = scalar_lea.smem [#allocation27], 6
    %139 = sst [smem:[%s138]] 384
    %s140 = scalar_lea.smem [#allocation27], 7
    %141 = sst [smem:[%s140]] 64
    %s142 = scalar_lea.smem [#allocation27], 8
    %143 = sst [smem:[%s142]] 4
    %145 = dma.general %s2, 36864, %s124, %s110, [#allocation26], [#allocation27], %s122, 0
    %s146 = smul.u32 8, 16
    %s147 = smul.u32 %s146, 2
    %s148 = smul.u32 %s147, 6
    %s149 = sshll.u32 %s148, 4
    %150 = dma.done [#allocation5], %s149
    %s151 = sld [smem:[#allocation7]]
    %s152 = sshra.s32 %s151, 3
    %s153 = sand.u32 %s151, 7
    %s154 = sshra.s32 %s151, 3
    %s155 = sand.u32 %s151, 7
    %s156 = smul.u32 %s152, 6
    %s157 = smul.u32 %s156, 8
    %s158 = sadd.s32 %s157, %s155
    %s159 = scalar_lea.vmem [#allocation2], %s158
    %v160 = vld [vmem:[%s159] ss:$8 sm:$0xf]
    %v161 = vld [vmem:[%s159] ss:$8 sm:$0x30]
    %v162 = vor.u32 %v160, %v161
    %v163 = vlaneseq
    %vm164 = vcmp.ge.s32.totalorder %v163, 0
    %vm165 = vcmp.lt.s32.totalorder %v163, 768
    %vm166 = vmand %vm164, %vm165
    %167 = vst.msk [vmem:[#allocation4] ss:$8 sm:$0xf] %vm166, %v162
    %168 = vst.msk [vmem:[#allocation4] ss:$8 sm:$0x30] %vm166, %v162
    %s169 = sld [smem:[#allocation7 + $0x1]]
    %s170 = sshra.s32 %s169, 3
    %s171 = sand.u32 %s169, 7
    %s172 = sshra.s32 %s169, 3
    %s173 = sand.u32 %s169, 7
    %s174 = smul.u32 %s170, 6
    %s175 = smul.u32 %s174, 8
    %s176 = sadd.s32 %s175, %s173
    %s177 = sadd.s32 96, %s176
    %s178 = scalar_lea.vmem [#allocation2], %s177
    %v179 = vld [vmem:[%s178] ss:$8 sm:$0xf]
    %v180 = vld [vmem:[%s178] ss:$8 sm:$0x30]
    %v181 = vor.u32 %v179, %v180
    %s182 = scalar_lea.vmem [#allocation4], 1
    %183 = vst.msk [vmem:[%s182] ss:$8 sm:$0xf] %vm166, %v181
    %184 = vst.msk [vmem:[%s182] ss:$8 sm:$0x30] %vm166, %v181
    %s185 = sld [smem:[#allocation7 + $0x2]]
    %s186 = sshra.s32 %s185, 3
    %s187 = sand.u32 %s185, 7
    %s188 = sshra.s32 %s185, 3
    %s189 = sand.u32 %s185, 7
    %s190 = smul.u32 %s186, 6
    %s191 = smul.u32 %s190, 8
    %s192 = sadd.s32 %s191, %s189
    %s193 = sadd.s32 192, %s192
    %s194 = scalar_lea.vmem [#allocation2], %s193
    %v195 = vld [vmem:[%s194] ss:$8 sm:$0xf]
    %v196 = vld [vmem:[%s194] ss:$8 sm:$0x30]
    %v197 = vor.u32 %v195, %v196
    %s198 = scalar_lea.vmem [#allocation4], 2
    %199 = vst.msk [vmem:[%s198] ss:$8 sm:$0xf] %vm166, %v197
    %200 = vst.msk [vmem:[%s198] ss:$8 sm:$0x30] %vm166, %v197
    %s201 = sld [smem:[#allocation7 + $0x3]]
    %s202 = sshra.s32 %s201, 3
    %s203 = sand.u32 %s201, 7
    %s204 = sshra.s32 %s201, 3
    %s205 = sand.u32 %s201, 7
    %s206 = smul.u32 %s202, 6
    %s207 = smul.u32 %s206, 8
    %s208 = sadd.s32 %s207, %s205
    %s209 = sadd.s32 288, %s208
    %s210 = scalar_lea.vmem [#allocation2], %s209
    %v211 = vld [vmem:[%s210] ss:$8 sm:$0xf]
    %v212 = vld [vmem:[%s210] ss:$8 sm:$0x30]
    %v213 = vor.u32 %v211, %v212
    %s214 = scalar_lea.vmem [#allocation4], 3
    %215 = vst.msk [vmem:[%s214] ss:$8 sm:$0xf] %vm166, %v213
    %216 = vst.msk [vmem:[%s214] ss:$8 sm:$0x30] %vm166, %v213
    %s217 = sld [smem:[#allocation7 + $0x4]]
    %s218 = sshra.s32 %s217, 3
    %s219 = sand.u32 %s217, 7
    %s220 = sshra.s32 %s217, 3
    %s221 = sand.u32 %s217, 7
    %s222 = smul.u32 %s218, 6
    %s223 = smul.u32 %s222, 8
    %s224 = sadd.s32 %s223, %s221
    %s225 = sadd.s32 384, %s224
    %s226 = scalar_lea.vmem [#allocation2], %s225
    %v227 = vld [vmem:[%s226] ss:$8 sm:$0xf]
    %v228 = vld [vmem:[%s226] ss:$8 sm:$0x30]
    %v229 = vor.u32 %v227, %v228
    %s230 = scalar_lea.vmem [#allocation4], 4
    %231 = vst.msk [vmem:[%s230] ss:$8 sm:$0xf] %vm166, %v229
    %232 = vst.msk [vmem:[%s230] ss:$8 sm:$0x30] %vm166, %v229
    %s233 = sld [smem:[#allocation7 + $0x5]]
    %s234 = sshra.s32 %s233, 3
    %s235 = sand.u32 %s233, 7
    %s236 = sshra.s32 %s233, 3
    %s237 = sand.u32 %s233, 7
    %s238 = smul.u32 %s234, 6
    %s239 = smul.u32 %s238, 8
    %s240 = sadd.s32 %s239, %s237
    %s241 = sadd.s32 480, %s240
    %s242 = scalar_lea.vmem [#allocation2], %s241
    %v243 = vld [vmem:[%s242] ss:$8 sm:$0xf]
    %v244 = vld [vmem:[%s242] ss:$8 sm:$0x30]
    %v245 = vor.u32 %v243, %v244
    %s246 = scalar_lea.vmem [#allocation4], 5
    %247 = vst.msk [vmem:[%s246] ss:$8 sm:$0xf] %vm166, %v245
    %248 = vst.msk [vmem:[%s246] ss:$8 sm:$0x30] %vm166, %v245
    %s249 = sld [smem:[#allocation7 + $0x6]]
    %s250 = sshra.s32 %s249, 3
    %s251 = sand.u32 %s249, 7
    %s252 = sshra.s32 %s249, 3
    %s253 = sand.u32 %s249, 7
    %s254 = smul.u32 %s250, 6
    %s255 = smul.u32 %s254, 8
    %s256 = sadd.s32 %s255, %s253
    %s257 = sadd.s32 576, %s256
    %s258 = scalar_lea.vmem [#allocation2], %s257
    %v259 = vld [vmem:[%s258] ss:$8 sm:$0xf]
    %v260 = vld [vmem:[%s258] ss:$8 sm:$0x30]
    %v261 = vor.u32 %v259, %v260
    %s262 = scalar_lea.vmem [#allocation4], 6
    %263 = vst.msk [vmem:[%s262] ss:$8 sm:$0xf] %vm166, %v261
    %264 = vst.msk [vmem:[%s262] ss:$8 sm:$0x30] %vm166, %v261
    %s265 = sld [smem:[#allocation7 + $0x7]]
    %s266 = sshra.s32 %s265, 3
    %s267 = sand.u32 %s265, 7
    %s268 = sshra.s32 %s265, 3
    %s269 = sand.u32 %s265, 7
    %s270 = smul.u32 %s266, 6
    %s271 = smul.u32 %s270, 8
    %s272 = sadd.s32 %s271, %s269
    %s273 = sadd.s32 672, %s272
    %s274 = scalar_lea.vmem [#allocation2], %s273
    %v275 = vld [vmem:[%s274] ss:$8 sm:$0xf]
    %v276 = vld [vmem:[%s274] ss:$8 sm:$0x30]
    %v277 = vor.u32 %v275, %v276
    %s278 = scalar_lea.vmem [#allocation4], 7
    %279 = vst.msk [vmem:[%s278] ss:$8 sm:$0xf] %vm166, %v277
    %280 = vst.msk [vmem:[%s278] ss:$8 sm:$0x30] %vm166, %v277
    %s281 = sld [smem:[#allocation7 + $0x8]]
    %s282 = sshra.s32 %s281, 3
    %s283 = sand.u32 %s281, 7
    %s284 = sshra.s32 %s281, 3
    %s285 = sand.u32 %s281, 7
    %s286 = smul.u32 %s282, 6
    %s287 = smul.u32 %s286, 8
    %s288 = sadd.s32 %s287, %s285
    %s289 = sadd.s32 768, %s288
    %s290 = scalar_lea.vmem [#allocation2], %s289
    %v291 = vld [vmem:[%s290] ss:$8 sm:$0xf]
    %v292 = vld [vmem:[%s290] ss:$8 sm:$0x30]
    %v293 = vor.u32 %v291, %v292
    %s294 = scalar_lea.vmem [#allocation4], 48
    %295 = vst.msk [vmem:[%s294] ss:$8 sm:$0xf] %vm166, %v293
    %296 = vst.msk [vmem:[%s294] ss:$8 sm:$0x30] %vm166, %v293
    %s297 = sld [smem:[#allocation7 + $0x9]]
    %s298 = sshra.s32 %s297, 3
    %s299 = sand.u32 %s297, 7
    %s300 = sshra.s32 %s297, 3
    %s301 = sand.u32 %s297, 7
    %s302 = smul.u32 %s298, 6
    %s303 = smul.u32 %s302, 8
    %s304 = sadd.s32 %s303, %s301
    %s305 = sadd.s32 864, %s304
    %s306 = scalar_lea.vmem [#allocation2], %s305
    %v307 = vld [vmem:[%s306] ss:$8 sm:$0xf]
    %v308 = vld [vmem:[%s306] ss:$8 sm:$0x30]
    %v309 = vor.u32 %v307, %v308
    %s310 = scalar_lea.vmem [#allocation4], 49
    %311 = vst.msk [vmem:[%s310] ss:$8 sm:$0xf] %vm166, %v309
    %312 = vst.msk [vmem:[%s310] ss:$8 sm:$0x30] %vm166, %v309
    %s313 = sld [smem:[#allocation7 + $0xa]]
    %s314 = sshra.s32 %s313, 3
    %s315 = sand.u32 %s313, 7
    %s316 = sshra.s32 %s313, 3
    %s317 = sand.u32 %s313, 7
    %s318 = smul.u32 %s314, 6
    %s319 = smul.u32 %s318, 8
    %s320 = sadd.s32 %s319, %s317
    %s321 = sadd.s32 960, %s320
    %s322 = scalar_lea.vmem [#allocation2], %s321
    %v323 = vld [vmem:[%s322] ss:$8 sm:$0xf]
    %v324 = vld [vmem:[%s322] ss:$8 sm:$0x30]
    %v325 = vor.u32 %v323, %v324
    %s326 = scalar_lea.vmem [#allocation4], 50
    %327 = vst.msk [vmem:[%s326] ss:$8 sm:$0xf] %vm166, %v325
    %328 = vst.msk [vmem:[%s326] ss:$8 sm:$0x30] %vm166, %v325
    %s329 = sld [smem:[#allocation7 + $0xb]]
    %s330 = sshra.s32 %s329, 3
    %s331 = sand.u32 %s329, 7
    %s332 = sshra.s32 %s329, 3
    %s333 = sand.u32 %s329, 7
    %s334 = smul.u32 %s330, 6
    %s335 = smul.u32 %s334, 8
    %s336 = sadd.s32 %s335, %s333
    %s337 = sadd.s32 1056, %s336
    %s338 = scalar_lea.vmem [#allocation2], %s337
    %v339 = vld [vmem:[%s338] ss:$8 sm:$0xf]
    %v340 = vld [vmem:[%s338] ss:$8 sm:$0x30]
    %v341 = vor.u32 %v339, %v340
    %s342 = scalar_lea.vmem [#allocation4], 51
    %343 = vst.msk [vmem:[%s342] ss:$8 sm:$0xf] %vm166, %v341
    %344 = vst.msk [vmem:[%s342] ss:$8 sm:$0x30] %vm166, %v341
    %s345 = sld [smem:[#allocation7 + $0xc]]
    %s346 = sshra.s32 %s345, 3
    %s347 = sand.u32 %s345, 7
    %s348 = sshra.s32 %s345, 3
    %s349 = sand.u32 %s345, 7
    %s350 = smul.u32 %s346, 6
    %s351 = smul.u32 %s350, 8
    %s352 = sadd.s32 %s351, %s349
    %s353 = sadd.s32 1152, %s352
    %s354 = scalar_lea.vmem [#allocation2], %s353
    %v355 = vld [vmem:[%s354] ss:$8 sm:$0xf]
    %v356 = vld [vmem:[%s354] ss:$8 sm:$0x30]
    %v357 = vor.u32 %v355, %v356
    %s358 = scalar_lea.vmem [#allocation4], 52
    %359 = vst.msk [vmem:[%s358] ss:$8 sm:$0xf] %vm166, %v357
    %360 = vst.msk [vmem:[%s358] ss:$8 sm:$0x30] %vm166, %v357
    %s361 = sld [smem:[#allocation7 + $0xd]]
    %s362 = sshra.s32 %s361, 3
    %s363 = sand.u32 %s361, 7
    %s364 = sshra.s32 %s361, 3
    %s365 = sand.u32 %s361, 7
    %s366 = smul.u32 %s362, 6
    %s367 = smul.u32 %s366, 8
    %s368 = sadd.s32 %s367, %s365
    %s369 = sadd.s32 1248, %s368
    %s370 = scalar_lea.vmem [#allocation2], %s369
    %v371 = vld [vmem:[%s370] ss:$8 sm:$0xf]
    %v372 = vld [vmem:[%s370] ss:$8 sm:$0x30]
    %v373 = vor.u32 %v371, %v372
    %s374 = scalar_lea.vmem [#allocation4], 53
    %375 = vst.msk [vmem:[%s374] ss:$8 sm:$0xf] %vm166, %v373
    %376 = vst.msk [vmem:[%s374] ss:$8 sm:$0x30] %vm166, %v373
    %s377 = sld [smem:[#allocation7 + $0xe]]
    %s378 = sshra.s32 %s377, 3
    %s379 = sand.u32 %s377, 7
    %s380 = sshra.s32 %s377, 3
    %s381 = sand.u32 %s377, 7
    %s382 = smul.u32 %s378, 6
    %s383 = smul.u32 %s382, 8
    %s384 = sadd.s32 %s383, %s381
    %s385 = sadd.s32 1344, %s384
    %s386 = scalar_lea.vmem [#allocation2], %s385
    %v387 = vld [vmem:[%s386] ss:$8 sm:$0xf]
    %v388 = vld [vmem:[%s386] ss:$8 sm:$0x30]
    %v389 = vor.u32 %v387, %v388
    %s390 = scalar_lea.vmem [#allocation4], 54
    %391 = vst.msk [vmem:[%s390] ss:$8 sm:$0xf] %vm166, %v389
    %392 = vst.msk [vmem:[%s390] ss:$8 sm:$0x30] %vm166, %v389
    %s393 = sld [smem:[#allocation7 + $0xf]]
    %s394 = sshra.s32 %s393, 3
    %s395 = sand.u32 %s393, 7
    %s396 = sshra.s32 %s393, 3
    %s397 = sand.u32 %s393, 7
    %s398 = smul.u32 %s394, 6
    %s399 = smul.u32 %s398, 8
    %s400 = sadd.s32 %s399, %s397
    %s401 = sadd.s32 1440, %s400
    %s402 = scalar_lea.vmem [#allocation2], %s401
    %v403 = vld [vmem:[%s402] ss:$8 sm:$0xf]
    %v404 = vld [vmem:[%s402] ss:$8 sm:$0x30]
    %v405 = vor.u32 %v403, %v404
    %s406 = scalar_lea.vmem [#allocation4], 55
    %407 = vst.msk [vmem:[%s406] ss:$8 sm:$0xf] %vm166, %v405
    %408 = vst.msk [vmem:[%s406] ss:$8 sm:$0x30] %vm166, %v405
    %s409 = smul.u32 4, 96
    %s410 = smul.u32 %s409, 6
    %s411 = sshll.u32 %s410, 4
    %412 = dma.done %s110, %s411
    %v413 = vld [vmem:[#allocation4] sm:$0xff]
    %v414 = vld [vmem:[#allocation4 + $0x8] sm:$0xff]
    %v415 = vld [vmem:[#allocation4 + $0x10] sm:$0xff]
    %v416 = vld [vmem:[#allocation4 + $0x18] sm:$0xff]
    %v417 = vld [vmem:[#allocation4 + $0x20] sm:$0xff]
    %v418 = vld [vmem:[#allocation4 + $0x28] sm:$0xff]
    %v419 = vld [vmem:[#allocation4 + $0x30] sm:$0xff]
    %v420 = vld [vmem:[#allocation4 + $0x38] sm:$0xff]
    %v421 = vld [vmem:[#allocation4 + $0x40] sm:$0xff]
    %v422 = vld [vmem:[#allocation4 + $0x48] sm:$0xff]
    %v423 = vld [vmem:[#allocation4 + $0x50] sm:$0xff]
    %v424 = vld [vmem:[#allocation4 + $0x58] sm:$0xff]
    %v425 = vpack.c.bf16 %v419, %v413
    %v426 = vpack.c.bf16 %v420, %v414
    %v427 = vpack.c.bf16 %v421, %v415
    %v428 = vpack.c.bf16 %v422, %v416
    %v429 = vpack.c.bf16 %v423, %v417
    %v430 = vpack.c.bf16 %v424, %v418
    %v431 = vld [vmem:[#allocation3] sm:$0xff]
    %v432 = vld [vmem:[#allocation3 + $0x8] sm:$0xff]
    %v433 = vld [vmem:[#allocation3 + $0x10] sm:$0xff]
    %v434 = vld [vmem:[#allocation3 + $0x18] sm:$0xff]
    %v435 = vld [vmem:[#allocation3 + $0x20] sm:$0xff]
    %v436 = vld [vmem:[#allocation3 + $0x28] sm:$0xff]
    %v437 = vld [vmem:[#allocation3 + $0x30] sm:$0xff]
    %v438 = vld [vmem:[#allocation3 + $0x38] sm:$0xff]
    %v439 = vld [vmem:[#allocation3 + $0x40] sm:$0xff]
    %v440 = vld [vmem:[#allocation3 + $0x48] sm:$0xff]
    %v441 = vld [vmem:[#allocation3 + $0x50] sm:$0xff]
    %v442 = vld [vmem:[#allocation3 + $0x58] sm:$0xff]
    %v443 = vld [vmem:[#allocation3 + $0x60] sm:$0xff]
    %v444 = vld [vmem:[#allocation3 + $0x68] sm:$0xff]
    %v445 = vld [vmem:[#allocation3 + $0x70] sm:$0xff]
    %v446 = vld [vmem:[#allocation3 + $0x78] sm:$0xff]
    %v447 = vld [vmem:[#allocation3 + $0x80] sm:$0xff]
    %v448 = vld [vmem:[#allocation3 + $0x88] sm:$0xff]
    %v449 = vld [vmem:[#allocation3 + $0x90] sm:$0xff]
    %v450 = vld [vmem:[#allocation3 + $0x98] sm:$0xff]
    %v451 = vld [vmem:[#allocation3 + $0xa0] sm:$0xff]
    %v452 = vld [vmem:[#allocation3 + $0xa8] sm:$0xff]
    %v453 = vld [vmem:[#allocation3 + $0xb0] sm:$0xff]
    %v454 = vld [vmem:[#allocation3 + $0xb8] sm:$0xff]
    %v455 = vld [vmem:[#allocation3 + $0xc0] sm:$0xff]
    %v456 = vld [vmem:[#allocation3 + $0xc8] sm:$0xff]
    %v457 = vld [vmem:[#allocation3 + $0xd0] sm:$0xff]
    %v458 = vld [vmem:[#allocation3 + $0xd8] sm:$0xff]
    %v459 = vld [vmem:[#allocation3 + $0xe0] sm:$0xff]
    %v460 = vld [vmem:[#allocation3 + $0xe8] sm:$0xff]
    %v461 = vld [vmem:[#allocation3 + $0xf0] sm:$0xff]
    %v462 = vld [vmem:[#allocation3 + $0xf8] sm:$0xff]
    %v463 = vld [vmem:[#allocation3 + $0x100] sm:$0xff]
    %v464 = vld [vmem:[#allocation3 + $0x108] sm:$0xff]
    %v465 = vld [vmem:[#allocation3 + $0x110] sm:$0xff]
    %v466 = vld [vmem:[#allocation3 + $0x118] sm:$0xff]
    %v467 = vld [vmem:[#allocation3 + $0x120] sm:$0xff]
    %v468 = vld [vmem:[#allocation3 + $0x128] sm:$0xff]
    %v469 = vld [vmem:[#allocation3 + $0x130] sm:$0xff]
    %v470 = vld [vmem:[#allocation3 + $0x138] sm:$0xff]
    %v471 = vld [vmem:[#allocation3 + $0x140] sm:$0xff]
    %v472 = vld [vmem:[#allocation3 + $0x148] sm:$0xff]
    %v473 = vld [vmem:[#allocation3 + $0x150] sm:$0xff]
    %v474 = vld [vmem:[#allocation3 + $0x158] sm:$0xff]
    %v475 = vld [vmem:[#allocation3 + $0x160] sm:$0xff]
    %v476 = vld [vmem:[#allocation3 + $0x168] sm:$0xff]
    %v477 = vld [vmem:[#allocation3 + $0x170] sm:$0xff]
    %v478 = vld [vmem:[#allocation3 + $0x178] sm:$0xff]
    %v479 = vld [vmem:[#allocation3 + $0x180] sm:$0xff]
    %v480 = vld [vmem:[#allocation3 + $0x188] sm:$0xff]
    %v481 = vld [vmem:[#allocation3 + $0x190] sm:$0xff]
    %v482 = vld [vmem:[#allocation3 + $0x198] sm:$0xff]
    %v483 = vld [vmem:[#allocation3 + $0x1a0] sm:$0xff]
    %v484 = vld [vmem:[#allocation3 + $0x1a8] sm:$0xff]
    %v485 = vld [vmem:[#allocation3 + $0x1b0] sm:$0xff]
    %v486 = vld [vmem:[#allocation3 + $0x1b8] sm:$0xff]
    %v487 = vld [vmem:[#allocation3 + $0x1c0] sm:$0xff]
    %v488 = vld [vmem:[#allocation3 + $0x1c8] sm:$0xff]
    %v489 = vld [vmem:[#allocation3 + $0x1d0] sm:$0xff]
    %v490 = vld [vmem:[#allocation3 + $0x1d8] sm:$0xff]
    %v491 = vld [vmem:[#allocation3 + $0x1e0] sm:$0xff]
    %v492 = vld [vmem:[#allocation3 + $0x1e8] sm:$0xff]
    %v493 = vld [vmem:[#allocation3 + $0x1f0] sm:$0xff]
    %v494 = vld [vmem:[#allocation3 + $0x1f8] sm:$0xff]
    %v495 = vld [vmem:[#allocation3 + $0x200] sm:$0xff]
    %v496 = vld [vmem:[#allocation3 + $0x208] sm:$0xff]
    %v497 = vld [vmem:[#allocation3 + $0x210] sm:$0xff]
    %v498 = vld [vmem:[#allocation3 + $0x218] sm:$0xff]
    %v499 = vld [vmem:[#allocation3 + $0x220] sm:$0xff]
    %v500 = vld [vmem:[#allocation3 + $0x228] sm:$0xff]
    %v501 = vld [vmem:[#allocation3 + $0x230] sm:$0xff]
    %v502 = vld [vmem:[#allocation3 + $0x238] sm:$0xff]
    %v503 = vld [vmem:[#allocation3 + $0x240] sm:$0xff]
    %v504 = vld [vmem:[#allocation3 + $0x248] sm:$0xff]
    %v505 = vld [vmem:[#allocation3 + $0x250] sm:$0xff]
    %v506 = vld [vmem:[#allocation3 + $0x258] sm:$0xff]
    %v507 = vld [vmem:[#allocation3 + $0x260] sm:$0xff]
    %v508 = vld [vmem:[#allocation3 + $0x268] sm:$0xff]
    %v509 = vld [vmem:[#allocation3 + $0x270] sm:$0xff]
    %v510 = vld [vmem:[#allocation3 + $0x278] sm:$0xff]
    %v511 = vld [vmem:[#allocation3 + $0x280] sm:$0xff]
    %v512 = vld [vmem:[#allocation3 + $0x288] sm:$0xff]
    %v513 = vld [vmem:[#allocation3 + $0x290] sm:$0xff]
    %v514 = vld [vmem:[#allocation3 + $0x298] sm:$0xff]
    %v515 = vld [vmem:[#allocation3 + $0x2a0] sm:$0xff]
    %v516 = vld [vmem:[#allocation3 + $0x2a8] sm:$0xff]
    %v517 = vld [vmem:[#allocation3 + $0x2b0] sm:$0xff]
    %v518 = vld [vmem:[#allocation3 + $0x2b8] sm:$0xff]
    %v519 = vld [vmem:[#allocation3 + $0x2c0] sm:$0xff]
    %v520 = vld [vmem:[#allocation3 + $0x2c8] sm:$0xff]
    %v521 = vld [vmem:[#allocation3 + $0x2d0] sm:$0xff]
    %v522 = vld [vmem:[#allocation3 + $0x2d8] sm:$0xff]
    %v523 = vld [vmem:[#allocation3 + $0x2e0] sm:$0xff]
    %v524 = vld [vmem:[#allocation3 + $0x2e8] sm:$0xff]
    %v525 = vld [vmem:[#allocation3 + $0x2f0] sm:$0xff]
    %v526 = vld [vmem:[#allocation3 + $0x2f8] sm:$0xff]
    %v527 = vld [vmem:[#allocation3 + $0x300] sm:$0xff]
    %v528 = vld [vmem:[#allocation3 + $0x308] sm:$0xff]
    %v529 = vld [vmem:[#allocation3 + $0x310] sm:$0xff]
    %v530 = vld [vmem:[#allocation3 + $0x318] sm:$0xff]
    %v531 = vld [vmem:[#allocation3 + $0x320] sm:$0xff]
    %v532 = vld [vmem:[#allocation3 + $0x328] sm:$0xff]
    %v533 = vld [vmem:[#allocation3 + $0x330] sm:$0xff]
    %v534 = vld [vmem:[#allocation3 + $0x338] sm:$0xff]
    %v535 = vld [vmem:[#allocation3 + $0x340] sm:$0xff]
    %v536 = vld [vmem:[#allocation3 + $0x348] sm:$0xff]
    %v537 = vld [vmem:[#allocation3 + $0x350] sm:$0xff]
    %v538 = vld [vmem:[#allocation3 + $0x358] sm:$0xff]
    %v539 = vld [vmem:[#allocation3 + $0x360] sm:$0xff]
    %v540 = vld [vmem:[#allocation3 + $0x368] sm:$0xff]
    %v541 = vld [vmem:[#allocation3 + $0x370] sm:$0xff]
    %v542 = vld [vmem:[#allocation3 + $0x378] sm:$0xff]
    %v543 = vld [vmem:[#allocation3 + $0x380] sm:$0xff]
    %v544 = vld [vmem:[#allocation3 + $0x388] sm:$0xff]
    %v545 = vld [vmem:[#allocation3 + $0x390] sm:$0xff]
    %v546 = vld [vmem:[#allocation3 + $0x398] sm:$0xff]
    %v547 = vld [vmem:[#allocation3 + $0x3a0] sm:$0xff]
    %v548 = vld [vmem:[#allocation3 + $0x3a8] sm:$0xff]
    %v549 = vld [vmem:[#allocation3 + $0x3b0] sm:$0xff]
    %v550 = vld [vmem:[#allocation3 + $0x3b8] sm:$0xff]
    %v551 = vld [vmem:[#allocation3 + $0x3c0] sm:$0xff]
    %v552 = vld [vmem:[#allocation3 + $0x3c8] sm:$0xff]
    %v553 = vld [vmem:[#allocation3 + $0x3d0] sm:$0xff]
    %v554 = vld [vmem:[#allocation3 + $0x3d8] sm:$0xff]
    %v555 = vld [vmem:[#allocation3 + $0x3e0] sm:$0xff]
    %v556 = vld [vmem:[#allocation3 + $0x3e8] sm:$0xff]
    %v557 = vld [vmem:[#allocation3 + $0x3f0] sm:$0xff]
    %v558 = vld [vmem:[#allocation3 + $0x3f8] sm:$0xff]
    %v559 = vld [vmem:[#allocation3 + $0x400] sm:$0xff]
    %v560 = vld [vmem:[#allocation3 + $0x408] sm:$0xff]
    %v561 = vld [vmem:[#allocation3 + $0x410] sm:$0xff]
    %v562 = vld [vmem:[#allocation3 + $0x418] sm:$0xff]
    %v563 = vld [vmem:[#allocation3 + $0x420] sm:$0xff]
    %v564 = vld [vmem:[#allocation3 + $0x428] sm:$0xff]
    %v565 = vld [vmem:[#allocation3 + $0x430] sm:$0xff]
    %v566 = vld [vmem:[#allocation3 + $0x438] sm:$0xff]
    %v567 = vld [vmem:[#allocation3 + $0x440] sm:$0xff]
    %v568 = vld [vmem:[#allocation3 + $0x448] sm:$0xff]
    %v569 = vld [vmem:[#allocation3 + $0x450] sm:$0xff]
    %v570 = vld [vmem:[#allocation3 + $0x458] sm:$0xff]
    %v571 = vld [vmem:[#allocation3 + $0x460] sm:$0xff]
    %v572 = vld [vmem:[#allocation3 + $0x468] sm:$0xff]
    %v573 = vld [vmem:[#allocation3 + $0x470] sm:$0xff]
    %v574 = vld [vmem:[#allocation3 + $0x478] sm:$0xff]
    %v575 = vld [vmem:[#allocation3 + $0x480] sm:$0xff]
    %v576 = vld [vmem:[#allocation3 + $0x488] sm:$0xff]
    %v577 = vld [vmem:[#allocation3 + $0x490] sm:$0xff]
    %v578 = vld [vmem:[#allocation3 + $0x498] sm:$0xff]
    %v579 = vld [vmem:[#allocation3 + $0x4a0] sm:$0xff]
    %v580 = vld [vmem:[#allocation3 + $0x4a8] sm:$0xff]
    %v581 = vld [vmem:[#allocation3 + $0x4b0] sm:$0xff]
    %v582 = vld [vmem:[#allocation3 + $0x4b8] sm:$0xff]
    %v583 = vld [vmem:[#allocation3 + $0x4c0] sm:$0xff]
    %v584 = vld [vmem:[#allocation3 + $0x4c8] sm:$0xff]
    %v585 = vld [vmem:[#allocation3 + $0x4d0] sm:$0xff]
    %v586 = vld [vmem:[#allocation3 + $0x4d8] sm:$0xff]
    %v587 = vld [vmem:[#allocation3 + $0x4e0] sm:$0xff]
    %v588 = vld [vmem:[#allocation3 + $0x4e8] sm:$0xff]
    %v589 = vld [vmem:[#allocation3 + $0x4f0] sm:$0xff]
    %v590 = vld [vmem:[#allocation3 + $0x4f8] sm:$0xff]
    %v591 = vld [vmem:[#allocation3 + $0x500] sm:$0xff]
    %v592 = vld [vmem:[#allocation3 + $0x508] sm:$0xff]
    %v593 = vld [vmem:[#allocation3 + $0x510] sm:$0xff]
    %v594 = vld [vmem:[#allocation3 + $0x518] sm:$0xff]
    %v595 = vld [vmem:[#allocation3 + $0x520] sm:$0xff]
    %v596 = vld [vmem:[#allocation3 + $0x528] sm:$0xff]
    %v597 = vld [vmem:[#allocation3 + $0x530] sm:$0xff]
    %v598 = vld [vmem:[#allocation3 + $0x538] sm:$0xff]
    %v599 = vld [vmem:[#allocation3 + $0x540] sm:$0xff]
    %v600 = vld [vmem:[#allocation3 + $0x548] sm:$0xff]
    %v601 = vld [vmem:[#allocation3 + $0x550] sm:$0xff]
    %v602 = vld [vmem:[#allocation3 + $0x558] sm:$0xff]
    %v603 = vld [vmem:[#allocation3 + $0x560] sm:$0xff]
    %v604 = vld [vmem:[#allocation3 + $0x568] sm:$0xff]
    %v605 = vld [vmem:[#allocation3 + $0x570] sm:$0xff]
    %v606 = vld [vmem:[#allocation3 + $0x578] sm:$0xff]
    %v607 = vld [vmem:[#allocation3 + $0x580] sm:$0xff]
    %v608 = vld [vmem:[#allocation3 + $0x588] sm:$0xff]
    %v609 = vld [vmem:[#allocation3 + $0x590] sm:$0xff]
    %v610 = vld [vmem:[#allocation3 + $0x598] sm:$0xff]
    %v611 = vld [vmem:[#allocation3 + $0x5a0] sm:$0xff]
    %v612 = vld [vmem:[#allocation3 + $0x5a8] sm:$0xff]
    %v613 = vld [vmem:[#allocation3 + $0x5b0] sm:$0xff]
    %v614 = vld [vmem:[#allocation3 + $0x5b8] sm:$0xff]
    %v615 = vld [vmem:[#allocation3 + $0x5c0] sm:$0xff]
    %v616 = vld [vmem:[#allocation3 + $0x5c8] sm:$0xff]
    %v617 = vld [vmem:[#allocation3 + $0x5d0] sm:$0xff]
    %v618 = vld [vmem:[#allocation3 + $0x5d8] sm:$0xff]
    %v619 = vld [vmem:[#allocation3 + $0x5e0] sm:$0xff]
    %v620 = vld [vmem:[#allocation3 + $0x5e8] sm:$0xff]
    %v621 = vld [vmem:[#allocation3 + $0x5f0] sm:$0xff]
    %v622 = vld [vmem:[#allocation3 + $0x5f8] sm:$0xff]
    %v623 = vld [vmem:[#allocation3 + $0x600] sm:$0xff]
    %v624 = vld [vmem:[#allocation3 + $0x608] sm:$0xff]
    %v625 = vld [vmem:[#allocation3 + $0x610] sm:$0xff]
    %v626 = vld [vmem:[#allocation3 + $0x618] sm:$0xff]
    %v627 = vld [vmem:[#allocation3 + $0x620] sm:$0xff]
    %v628 = vld [vmem:[#allocation3 + $0x628] sm:$0xff]
    %v629 = vld [vmem:[#allocation3 + $0x630] sm:$0xff]
    %v630 = vld [vmem:[#allocation3 + $0x638] sm:$0xff]
    %v631 = vld [vmem:[#allocation3 + $0x640] sm:$0xff]
    %v632 = vld [vmem:[#allocation3 + $0x648] sm:$0xff]
    %v633 = vld [vmem:[#allocation3 + $0x650] sm:$0xff]
    %v634 = vld [vmem:[#allocation3 + $0x658] sm:$0xff]
    %v635 = vld [vmem:[#allocation3 + $0x660] sm:$0xff]
    %v636 = vld [vmem:[#allocation3 + $0x668] sm:$0xff]
    %v637 = vld [vmem:[#allocation3 + $0x670] sm:$0xff]
    %v638 = vld [vmem:[#allocation3 + $0x678] sm:$0xff]
    %v639 = vld [vmem:[#allocation3 + $0x680] sm:$0xff]
    %v640 = vld [vmem:[#allocation3 + $0x688] sm:$0xff]
    %v641 = vld [vmem:[#allocation3 + $0x690] sm:$0xff]
    %v642 = vld [vmem:[#allocation3 + $0x698] sm:$0xff]
    %v643 = vld [vmem:[#allocation3 + $0x6a0] sm:$0xff]
    %v644 = vld [vmem:[#allocation3 + $0x6a8] sm:$0xff]
    %v645 = vld [vmem:[#allocation3 + $0x6b0] sm:$0xff]
    %v646 = vld [vmem:[#allocation3 + $0x6b8] sm:$0xff]
    %v647 = vld [vmem:[#allocation3 + $0x6c0] sm:$0xff]
    %v648 = vld [vmem:[#allocation3 + $0x6c8] sm:$0xff]
    %v649 = vld [vmem:[#allocation3 + $0x6d0] sm:$0xff]
    %v650 = vld [vmem:[#allocation3 + $0x6d8] sm:$0xff]
    %v651 = vld [vmem:[#allocation3 + $0x6e0] sm:$0xff]
    %v652 = vld [vmem:[#allocation3 + $0x6e8] sm:$0xff]
    %v653 = vld [vmem:[#allocation3 + $0x6f0] sm:$0xff]
    %v654 = vld [vmem:[#allocation3 + $0x6f8] sm:$0xff]
    %v655 = vld [vmem:[#allocation3 + $0x700] sm:$0xff]
    %v656 = vld [vmem:[#allocation3 + $0x708] sm:$0xff]
    %v657 = vld [vmem:[#allocation3 + $0x710] sm:$0xff]
    %v658 = vld [vmem:[#allocation3 + $0x718] sm:$0xff]
    %v659 = vld [vmem:[#allocation3 + $0x720] sm:$0xff]
    %v660 = vld [vmem:[#allocation3 + $0x728] sm:$0xff]
    %v661 = vld [vmem:[#allocation3 + $0x730] sm:$0xff]
    %v662 = vld [vmem:[#allocation3 + $0x738] sm:$0xff]
    %v663 = vld [vmem:[#allocation3 + $0x740] sm:$0xff]
    %v664 = vld [vmem:[#allocation3 + $0x748] sm:$0xff]
    %v665 = vld [vmem:[#allocation3 + $0x750] sm:$0xff]
    %v666 = vld [vmem:[#allocation3 + $0x758] sm:$0xff]
    %v667 = vld [vmem:[#allocation3 + $0x760] sm:$0xff]
    %v668 = vld [vmem:[#allocation3 + $0x768] sm:$0xff]
    %v669 = vld [vmem:[#allocation3 + $0x770] sm:$0xff]
    %v670 = vld [vmem:[#allocation3 + $0x778] sm:$0xff]
    %v671 = vld [vmem:[#allocation3 + $0x780] sm:$0xff]
    %v672 = vld [vmem:[#allocation3 + $0x788] sm:$0xff]
    %v673 = vld [vmem:[#allocation3 + $0x790] sm:$0xff]
    %v674 = vld [vmem:[#allocation3 + $0x798] sm:$0xff]
    %v675 = vld [vmem:[#allocation3 + $0x7a0] sm:$0xff]
    %v676 = vld [vmem:[#allocation3 + $0x7a8] sm:$0xff]
    %v677 = vld [vmem:[#allocation3 + $0x7b0] sm:$0xff]
    %v678 = vld [vmem:[#allocation3 + $0x7b8] sm:$0xff]
    %v679 = vld [vmem:[#allocation3 + $0x7c0] sm:$0xff]
    %v680 = vld [vmem:[#allocation3 + $0x7c8] sm:$0xff]
    %v681 = vld [vmem:[#allocation3 + $0x7d0] sm:$0xff]
    %v682 = vld [vmem:[#allocation3 + $0x7d8] sm:$0xff]
    %v683 = vld [vmem:[#allocation3 + $0x7e0] sm:$0xff]
    %v684 = vld [vmem:[#allocation3 + $0x7e8] sm:$0xff]
    %v685 = vld [vmem:[#allocation3 + $0x7f0] sm:$0xff]
    %v686 = vld [vmem:[#allocation3 + $0x7f8] sm:$0xff]
    %v687 = vld [vmem:[#allocation3 + $0x800] sm:$0xff]
    %v688 = vld [vmem:[#allocation3 + $0x808] sm:$0xff]
    %v689 = vld [vmem:[#allocation3 + $0x810] sm:$0xff]
    %v690 = vld [vmem:[#allocation3 + $0x818] sm:$0xff]
    %v691 = vld [vmem:[#allocation3 + $0x820] sm:$0xff]
    %v692 = vld [vmem:[#allocation3 + $0x828] sm:$0xff]
    %v693 = vld [vmem:[#allocation3 + $0x830] sm:$0xff]
    %v694 = vld [vmem:[#allocation3 + $0x838] sm:$0xff]
    %v695 = vld [vmem:[#allocation3 + $0x840] sm:$0xff]
    %v696 = vld [vmem:[#allocation3 + $0x848] sm:$0xff]
    %v697 = vld [vmem:[#allocation3 + $0x850] sm:$0xff]
    %v698 = vld [vmem:[#allocation3 + $0x858] sm:$0xff]
    %v699 = vld [vmem:[#allocation3 + $0x860] sm:$0xff]
    %v700 = vld [vmem:[#allocation3 + $0x868] sm:$0xff]
    %v701 = vld [vmem:[#allocation3 + $0x870] sm:$0xff]
    %v702 = vld [vmem:[#allocation3 + $0x878] sm:$0xff]
    %v703 = vld [vmem:[#allocation3 + $0x880] sm:$0xff]
    %v704 = vld [vmem:[#allocation3 + $0x888] sm:$0xff]
    %v705 = vld [vmem:[#allocation3 + $0x890] sm:$0xff]
    %v706 = vld [vmem:[#allocation3 + $0x898] sm:$0xff]
    %v707 = vld [vmem:[#allocation3 + $0x8a0] sm:$0xff]
    %v708 = vld [vmem:[#allocation3 + $0x8a8] sm:$0xff]
    %v709 = vld [vmem:[#allocation3 + $0x8b0] sm:$0xff]
    %v710 = vld [vmem:[#allocation3 + $0x8b8] sm:$0xff]
    %v711 = vld [vmem:[#allocation3 + $0x8c0] sm:$0xff]
    %v712 = vld [vmem:[#allocation3 + $0x8c8] sm:$0xff]
    %v713 = vld [vmem:[#allocation3 + $0x8d0] sm:$0xff]
    %v714 = vld [vmem:[#allocation3 + $0x8d8] sm:$0xff]
    %v715 = vld [vmem:[#allocation3 + $0x8e0] sm:$0xff]
    %v716 = vld [vmem:[#allocation3 + $0x8e8] sm:$0xff]
    %v717 = vld [vmem:[#allocation3 + $0x8f0] sm:$0xff]
    %v718 = vld [vmem:[#allocation3 + $0x8f8] sm:$0xff]
    %v719 = vld [vmem:[#allocation11] sm:$0x3f]
    %v721 = vlaneseq
    %v722 = vshrl.u32 %v721, 7
    %v723 = vsub.s32 0, %v722
    %v724 = vrot.slane %v719, %v723
    %v725 = vlaneseq
    %v726 = vshrl.u32 %v725, 7
    %v727 = vsub.s32 1, %v726
    %v728 = vrot.slane %v719, %v727
    %v729 = vlaneseq
    %v730 = vshrl.u32 %v729, 7
    %v731 = vsub.s32 2, %v730
    %v732 = vrot.slane %v719, %v731
    %v733 = vlaneseq
    %v734 = vshrl.u32 %v733, 7
    %v735 = vsub.s32 3, %v734
    %v736 = vrot.slane %v719, %v735
    %v737 = vlaneseq
    %v738 = vshrl.u32 %v737, 7
    %v739 = vsub.s32 4, %v738
    %v740 = vrot.slane %v719, %v739
    %v741 = vlaneseq
    %v742 = vshrl.u32 %v741, 7
    %v743 = vsub.s32 5, %v742
    %v744 = vrot.slane %v719, %v743
    %751 = vmatprep.subr.bf16.mxu0 %v432
    %752 = vmatpush1.bf16.msra.mxu0 %v431
    %753 = vmatprep.subr.bf16.mxu0 %v438
    %754 = vmatpush1.bf16.msra.mxu0 %v437
    %755 = vmatprep.subr.bf16.mxu0 %v444
    %756 = vmatpush1.bf16.msra.mxu0 %v443
    %757 = vmatprep.subr.bf16.mxu0 %v450
    %758 = vmatpush1.bf16.msra.mxu0 %v449
    %759 = vmatprep.subr.bf16.mxu0 %v456
    %760 = vmatpush1.bf16.msra.mxu0 %v455
    %761 = vmatprep.subr.bf16.mxu0 %v462
    %762 = vmatpush1.bf16.msra.mxu0 %v461
    %763 = vmatprep.subr.bf16.mxu0 %v468
    %764 = vmatpush1.bf16.msra.mxu0 %v467
    %765 = vmatprep.subr.bf16.mxu0 %v474
    %766 = vmatpush1.bf16.msra.mxu0 %v473
    %767 = vmatprep.subr.bf16.mxu0 %v480
    %768 = vmatpush1.bf16.msra.mxu0 %v479
    %769 = vmatprep.subr.bf16.mxu0 %v486
    %770 = vmatpush1.bf16.msra.mxu0 %v485
    %771 = vmatprep.subr.bf16.mxu0 %v492
    %772 = vmatpush1.bf16.msra.mxu0 %v491
    %773 = vmatprep.subr.bf16.mxu0 %v498
    %774 = vmatpush1.bf16.msra.mxu0 %v497
    %775 = vmatprep.subr.bf16.mxu0 %v504
    %776 = vmatpush1.bf16.msra.mxu0 %v503
    %777 = vmatprep.subr.bf16.mxu0 %v510
    %778 = vmatpush1.bf16.msra.mxu0 %v509
    %779 = vmatprep.subr.bf16.mxu0 %v516
    %780 = vmatpush1.bf16.msra.mxu0 %v515
    %781 = vmatprep.subr.bf16.mxu0 %v522
    %782 = vmatpush1.bf16.msra.mxu0 %v521
    %783 = vmatprep.mubr.bf16.mxu0 %v426
    %784 = vmatmul.mubr.bf16.gmra.mrb[0].mxu0 %v425
    %v785 = vpop.f32.mrb[0].mxu0
    %v786 = vadd.f32 %v724, %v785
    %v787 = vpop.f32.mrb[0].mxu0
    %v788 = vadd.f32 %v728, %v787
    %v789 = vpop.f32.mrb[0].mxu0
    %v790 = vadd.f32 %v724, %v789
    %v791 = vpop.f32.mrb[0].mxu0
    %v792 = vadd.f32 %v728, %v791
    %793 = vdwg.mxu0
    %794 = vmatprep.subr.bf16.mxu0 %v528
    %795 = vmatpush1.bf16.msra.mxu0 %v527
    %796 = vmatprep.subr.bf16.mxu0 %v534
    %797 = vmatpush1.bf16.msra.mxu0 %v533
    %798 = vmatprep.subr.bf16.mxu0 %v540
    %799 = vmatpush1.bf16.msra.mxu0 %v539
    %800 = vmatprep.subr.bf16.mxu0 %v546
    %801 = vmatpush1.bf16.msra.mxu0 %v545
    %802 = vmatprep.subr.bf16.mxu0 %v552
    %803 = vmatpush1.bf16.msra.mxu0 %v551
    %804 = vmatprep.subr.bf16.mxu0 %v558
    %805 = vmatpush1.bf16.msra.mxu0 %v557
    %806 = vmatprep.subr.bf16.mxu0 %v564
    %807 = vmatpush1.bf16.msra.mxu0 %v563
    %808 = vmatprep.subr.bf16.mxu0 %v570
    %809 = vmatpush1.bf16.msra.mxu0 %v569
    %810 = vmatprep.subr.bf16.mxu0 %v576
    %811 = vmatpush1.bf16.msra.mxu0 %v575
    %812 = vmatprep.subr.bf16.mxu0 %v582
    %813 = vmatpush1.bf16.msra.mxu0 %v581
    %814 = vmatprep.subr.bf16.mxu0 %v588
    %815 = vmatpush1.bf16.msra.mxu0 %v587
    %816 = vmatprep.subr.bf16.mxu0 %v594
    %817 = vmatpush1.bf16.msra.mxu0 %v593
    %818 = vmatprep.subr.bf16.mxu0 %v600
    %819 = vmatpush1.bf16.msra.mxu0 %v599
    %820 = vmatprep.subr.bf16.mxu0 %v606
    %821 = vmatpush1.bf16.msra.mxu0 %v605
    %822 = vmatprep.subr.bf16.mxu0 %v612
    %823 = vmatpush1.bf16.msra.mxu0 %v611
    %824 = vmatprep.subr.bf16.mxu0 %v618
    %825 = vmatpush1.bf16.msra.mxu0 %v617
    %826 = vmatprep.mubr.bf16.mxu0 %v428
    %827 = vmatmul.mubr.bf16.gmra.mrb[0].mxu0 %v427
    %v828 = vpop.f32.mrb[0].mxu0
    %v829 = vadd.f32 %v786, %v828
    %v830 = vpop.f32.mrb[0].mxu0
    %v831 = vadd.f32 %v788, %v830
    %v832 = vpop.f32.mrb[0].mxu0
    %v833 = vadd.f32 %v790, %v832
    %v834 = vpop.f32.mrb[0].mxu0
    %v835 = vadd.f32 %v792, %v834
    %836 = vdwg.mxu0
    %837 = vmatprep.subr.bf16.mxu0 %v624
    %838 = vmatpush1.bf16.msra.mxu0 %v623
    %839 = vmatprep.subr.bf16.mxu0 %v630
    %840 = vmatpush1.bf16.msra.mxu0 %v629
    %841 = vmatprep.subr.bf16.mxu0 %v636
    %842 = vmatpush1.bf16.msra.mxu0 %v635
    %843 = vmatprep.subr.bf16.mxu0 %v642
    %844 = vmatpush1.bf16.msra.mxu0 %v641
    %845 = vmatprep.subr.bf16.mxu0 %v648
    %846 = vmatpush1.bf16.msra.mxu0 %v647
    %847 = vmatprep.subr.bf16.mxu0 %v654
    %848 = vmatpush1.bf16.msra.mxu0 %v653
    %849 = vmatprep.subr.bf16.mxu0 %v660
    %850 = vmatpush1.bf16.msra.mxu0 %v659
    %851 = vmatprep.subr.bf16.mxu0 %v666
    %852 = vmatpush1.bf16.msra.mxu0 %v665
    %853 = vmatprep.subr.bf16.mxu0 %v672
    %854 = vmatpush1.bf16.msra.mxu0 %v671
    %855 = vmatprep.subr.bf16.mxu0 %v678
    %856 = vmatpush1.bf16.msra.mxu0 %v677
    %857 = vmatprep.subr.bf16.mxu0 %v684
    %858 = vmatpush1.bf16.msra.mxu0 %v683
    %859 = vmatprep.subr.bf16.mxu0 %v690
    %860 = vmatpush1.bf16.msra.mxu0 %v689
    %861 = vmatprep.subr.bf16.mxu0 %v696
    %862 = vmatpush1.bf16.msra.mxu0 %v695
    %863 = vmatprep.subr.bf16.mxu0 %v702
    %864 = vmatpush1.bf16.msra.mxu0 %v701
    %865 = vmatprep.subr.bf16.mxu0 %v708
    %866 = vmatpush1.bf16.msra.mxu0 %v707
    %867 = vmatprep.subr.bf16.mxu0 %v714
    %868 = vmatpush1.bf16.msra.mxu0 %v713
    %869 = vmatprep.mubr.bf16.mxu0 %v430
    %870 = vmatmul.mubr.bf16.gmra.mrb[0].mxu0 %v429
    %v871 = vpop.f32.mrb[0].mxu0
    %v872 = vadd.f32 %v829, %v871
    %v873 = vpop.f32.mrb[0].mxu0
    %v874 = vadd.f32 %v831, %v873
    %v875 = vpop.f32.mrb[0].mxu0
    %v876 = vadd.f32 %v833, %v875
    %v877 = vpop.f32.mrb[0].mxu0
    %v878 = vadd.f32 %v835, %v877
    %879 = vdwg.mxu0
    %880 = vmatprep.subr.bf16.mxu0 %v434
    %881 = vmatpush1.bf16.msra.mxu0 %v433
    %882 = vmatprep.subr.bf16.mxu0 %v440
    %883 = vmatpush1.bf16.msra.mxu0 %v439
    %884 = vmatprep.subr.bf16.mxu0 %v446
    %885 = vmatpush1.bf16.msra.mxu0 %v445
    %886 = vmatprep.subr.bf16.mxu0 %v452
    %887 = vmatpush1.bf16.msra.mxu0 %v451
    %888 = vmatprep.subr.bf16.mxu0 %v458
    %889 = vmatpush1.bf16.msra.mxu0 %v457
    %890 = vmatprep.subr.bf16.mxu0 %v464
    %891 = vmatpush1.bf16.msra.mxu0 %v463
    %892 = vmatprep.subr.bf16.mxu0 %v470
    %893 = vmatpush1.bf16.msra.mxu0 %v469
    %894 = vmatprep.subr.bf16.mxu0 %v476
    %895 = vmatpush1.bf16.msra.mxu0 %v475
    %896 = vmatprep.subr.bf16.mxu0 %v482
    %897 = vmatpush1.bf16.msra.mxu0 %v481
    %898 = vmatprep.subr.bf16.mxu0 %v488
    %899 = vmatpush1.bf16.msra.mxu0 %v487
    %900 = vmatprep.subr.bf16.mxu0 %v494
    %901 = vmatpush1.bf16.msra.mxu0 %v493
    %902 = vmatprep.subr.bf16.mxu0 %v500
    %903 = vmatpush1.bf16.msra.mxu0 %v499
    %904 = vmatprep.subr.bf16.mxu0 %v506
    %905 = vmatpush1.bf16.msra.mxu0 %v505
    %906 = vmatprep.subr.bf16.mxu0 %v512
    %907 = vmatpush1.bf16.msra.mxu0 %v511
    %908 = vmatprep.subr.bf16.mxu0 %v518
    %909 = vmatpush1.bf16.msra.mxu0 %v517
    %910 = vmatprep.subr.bf16.mxu0 %v524
    %911 = vmatpush1.bf16.msra.mxu0 %v523
    %912 = vmatprep.mubr.bf16.mxu0 %v426
    %913 = vmatmul.mubr.bf16.gmra.mrb[0].mxu0 %v425
    %v914 = vpop.f32.mrb[0].mxu0
    %v915 = vadd.f32 %v732, %v914
    %v916 = vpop.f32.mrb[0].mxu0
    %v917 = vadd.f32 %v736, %v916
    %v918 = vpop.f32.mrb[0].mxu0
    %v919 = vadd.f32 %v732, %v918
    %v920 = vpop.f32.mrb[0].mxu0
    %v921 = vadd.f32 %v736, %v920
    %922 = vdwg.mxu0
    %923 = vmatprep.subr.bf16.mxu0 %v530
    %924 = vmatpush1.bf16.msra.mxu0 %v529
    %925 = vmatprep.subr.bf16.mxu0 %v536
    %926 = vmatpush1.bf16.msra.mxu0 %v535
    %927 = vmatprep.subr.bf16.mxu0 %v542
    %928 = vmatpush1.bf16.msra.mxu0 %v541
    %929 = vmatprep.subr.bf16.mxu0 %v548
    %930 = vmatpush1.bf16.msra.mxu0 %v547
    %931 = vmatprep.subr.bf16.mxu0 %v554
    %932 = vmatpush1.bf16.msra.mxu0 %v553
    %933 = vmatprep.subr.bf16.mxu0 %v560
    %934 = vmatpush1.bf16.msra.mxu0 %v559
    %935 = vmatprep.subr.bf16.mxu0 %v566
    %936 = vmatpush1.bf16.msra.mxu0 %v565
    %937 = vmatprep.subr.bf16.mxu0 %v572
    %938 = vmatpush1.bf16.msra.mxu0 %v571
    %939 = vmatprep.subr.bf16.mxu0 %v578
    %940 = vmatpush1.bf16.msra.mxu0 %v577
    %941 = vmatprep.subr.bf16.mxu0 %v584
    %942 = vmatpush1.bf16.msra.mxu0 %v583
    %943 = vmatprep.subr.bf16.mxu0 %v590
    %944 = vmatpush1.bf16.msra.mxu0 %v589
    %945 = vmatprep.subr.bf16.mxu0 %v596
    %946 = vmatpush1.bf16.msra.mxu0 %v595
    %947 = vmatprep.subr.bf16.mxu0 %v602
    %948 = vmatpush1.bf16.msra.mxu0 %v601
    %949 = vmatprep.subr.bf16.mxu0 %v608
    %950 = vmatpush1.bf16.msra.mxu0 %v607
    %951 = vmatprep.subr.bf16.mxu0 %v614
    %952 = vmatpush1.bf16.msra.mxu0 %v613
    %953 = vmatprep.subr.bf16.mxu0 %v620
    %954 = vmatpush1.bf16.msra.mxu0 %v619
    %955 = vmatprep.mubr.bf16.mxu0 %v428
    %956 = vmatmul.mubr.bf16.gmra.mrb[0].mxu0 %v427
    %v957 = vpop.f32.mrb[0].mxu0
    %v958 = vadd.f32 %v915, %v957
    %v959 = vpop.f32.mrb[0].mxu0
    %v960 = vadd.f32 %v917, %v959
    %v961 = vpop.f32.mrb[0].mxu0
    %v962 = vadd.f32 %v919, %v961
    %v963 = vpop.f32.mrb[0].mxu0
    %v964 = vadd.f32 %v921, %v963
    %965 = vdwg.mxu0
    %966 = vmatprep.subr.bf16.mxu0 %v626
    %967 = vmatpush1.bf16.msra.mxu0 %v625
    %968 = vmatprep.subr.bf16.mxu0 %v632
    %969 = vmatpush1.bf16.msra.mxu0 %v631
    %970 = vmatprep.subr.bf16.mxu0 %v638
    %971 = vmatpush1.bf16.msra.mxu0 %v637
    %972 = vmatprep.subr.bf16.mxu0 %v644
    %973 = vmatpush1.bf16.msra.mxu0 %v643
    %974 = vmatprep.subr.bf16.mxu0 %v650
    %975 = vmatpush1.bf16.msra.mxu0 %v649
    %976 = vmatprep.subr.bf16.mxu0 %v656
    %977 = vmatpush1.bf16.msra.mxu0 %v655
    %978 = vmatprep.subr.bf16.mxu0 %v662
    %979 = vmatpush1.bf16.msra.mxu0 %v661
    %980 = vmatprep.subr.bf16.mxu0 %v668
    %981 = vmatpush1.bf16.msra.mxu0 %v667
    %982 = vmatprep.subr.bf16.mxu0 %v674
    %983 = vmatpush1.bf16.msra.mxu0 %v673
    %984 = vmatprep.subr.bf16.mxu0 %v680
    %985 = vmatpush1.bf16.msra.mxu0 %v679
    %986 = vmatprep.subr.bf16.mxu0 %v686
    %987 = vmatpush1.bf16.msra.mxu0 %v685
    %988 = vmatprep.subr.bf16.mxu0 %v692
    %989 = vmatpush1.bf16.msra.mxu0 %v691
    %990 = vmatprep.subr.bf16.mxu0 %v698
    %991 = vmatpush1.bf16.msra.mxu0 %v697
    %992 = vmatprep.subr.bf16.mxu0 %v704
    %993 = vmatpush1.bf16.msra.mxu0 %v703
    %994 = vmatprep.subr.bf16.mxu0 %v710
    %995 = vmatpush1.bf16.msra.mxu0 %v709
    %996 = vmatprep.subr.bf16.mxu0 %v716
    %997 = vmatpush1.bf16.msra.mxu0 %v715
    %998 = vmatprep.mubr.bf16.mxu0 %v430
    %999 = vmatmul.mubr.bf16.gmra.mrb[0].mxu0 %v429
    %v1000 = vpop.f32.mrb[0].mxu0
    %v1001 = vadd.f32 %v958, %v1000
    %v1002 = vpop.f32.mrb[0].mxu0
    %v1003 = vadd.f32 %v960, %v1002
    %v1004 = vpop.f32.mrb[0].mxu0
    %v1005 = vadd.f32 %v962, %v1004
    %v1006 = vpop.f32.mrb[0].mxu0
    %v1007 = vadd.f32 %v964, %v1006
    %1008 = vdwg.mxu0
    %1009 = vmatprep.subr.bf16.mxu0 %v436
    %1010 = vmatpush1.bf16.msra.mxu0 %v435
    %1011 = vmatprep.subr.bf16.mxu0 %v442
    %1012 = vmatpush1.bf16.msra.mxu0 %v441
    %1013 = vmatprep.subr.bf16.mxu0 %v448
    %1014 = vmatpush1.bf16.msra.mxu0 %v447
    %1015 = vmatprep.subr.bf16.mxu0 %v454
    %1016 = vmatpush1.bf16.msra.mxu0 %v453
    %1017 = vmatprep.subr.bf16.mxu0 %v460
    %1018 = vmatpush1.bf16.msra.mxu0 %v459
    %1019 = vmatprep.subr.bf16.mxu0 %v466
    %1020 = vmatpush1.bf16.msra.mxu0 %v465
    %1021 = vmatprep.subr.bf16.mxu0 %v472
    %1022 = vmatpush1.bf16.msra.mxu0 %v471
    %1023 = vmatprep.subr.bf16.mxu0 %v478
    %1024 = vmatpush1.bf16.msra.mxu0 %v477
    %1025 = vmatprep.subr.bf16.mxu0 %v484
    %1026 = vmatpush1.bf16.msra.mxu0 %v483
    %1027 = vmatprep.subr.bf16.mxu0 %v490
    %1028 = vmatpush1.bf16.msra.mxu0 %v489
    %1029 = vmatprep.subr.bf16.mxu0 %v496
    %1030 = vmatpush1.bf16.msra.mxu0 %v495
    %1031 = vmatprep.subr.bf16.mxu0 %v502
    %1032 = vmatpush1.bf16.msra.mxu0 %v501
    %1033 = vmatprep.subr.bf16.mxu0 %v508
    %1034 = vmatpush1.bf16.msra.mxu0 %v507
    %1035 = vmatprep.subr.bf16.mxu0 %v514
    %1036 = vmatpush1.bf16.msra.mxu0 %v513
    %1037 = vmatprep.subr.bf16.mxu0 %v520
    %1038 = vmatpush1.bf16.msra.mxu0 %v519
    %1039 = vmatprep.subr.bf16.mxu0 %v526
    %1040 = vmatpush1.bf16.msra.mxu0 %v525
    %1041 = vmatprep.mubr.bf16.mxu0 %v426
    %1042 = vmatmul.mubr.bf16.gmra.mrb[0].mxu0 %v425
    %v1043 = vpop.f32.mrb[0].mxu0
    %v1044 = vadd.f32 %v740, %v1043
    %v1045 = vpop.f32.mrb[0].mxu0
    %v1046 = vadd.f32 %v744, %v1045
    %v1047 = vpop.f32.mrb[0].mxu0
    %v1048 = vadd.f32 %v740, %v1047
    %v1049 = vpop.f32.mrb[0].mxu0
    %v1050 = vadd.f32 %v744, %v1049
    %1051 = vdwg.mxu0
    %1052 = vmatprep.subr.bf16.mxu0 %v532
    %1053 = vmatpush1.bf16.msra.mxu0 %v531
    %1054 = vmatprep.subr.bf16.mxu0 %v538
    %1055 = vmatpush1.bf16.msra.mxu0 %v537
    %1056 = vmatprep.subr.bf16.mxu0 %v544
    %1057 = vmatpush1.bf16.msra.mxu0 %v543
    %1058 = vmatprep.subr.bf16.mxu0 %v550
    %1059 = vmatpush1.bf16.msra.mxu0 %v549
    %1060 = vmatprep.subr.bf16.mxu0 %v556
    %1061 = vmatpush1.bf16.msra.mxu0 %v555
    %1062 = vmatprep.subr.bf16.mxu0 %v562
    %1063 = vmatpush1.bf16.msra.mxu0 %v561
    %1064 = vmatprep.subr.bf16.mxu0 %v568
    %1065 = vmatpush1.bf16.msra.mxu0 %v567
    %1066 = vmatprep.subr.bf16.mxu0 %v574
    %1067 = vmatpush1.bf16.msra.mxu0 %v573
    %1068 = vmatprep.subr.bf16.mxu0 %v580
    %1069 = vmatpush1.bf16.msra.mxu0 %v579
    %1070 = vmatprep.subr.bf16.mxu0 %v586
    %1071 = vmatpush1.bf16.msra.mxu0 %v585
    %1072 = vmatprep.subr.bf16.mxu0 %v592
    %1073 = vmatpush1.bf16.msra.mxu0 %v591
    %1074 = vmatprep.subr.bf16.mxu0 %v598
    %1075 = vmatpush1.bf16.msra.mxu0 %v597
    %1076 = vmatprep.subr.bf16.mxu0 %v604
    %1077 = vmatpush1.bf16.msra.mxu0 %v603
    %1078 = vmatprep.subr.bf16.mxu0 %v610
    %1079 = vmatpush1.bf16.msra.mxu0 %v609
    %1080 = vmatprep.subr.bf16.mxu0 %v616
    %1081 = vmatpush1.bf16.msra.mxu0 %v615
    %1082 = vmatprep.subr.bf16.mxu0 %v622
    %1083 = vmatpush1.bf16.msra.mxu0 %v621
    %1084 = vmatprep.mubr.bf16.mxu0 %v428
    %1085 = vmatmul.mubr.bf16.gmra.mrb[0].mxu0 %v427
    %v1086 = vpop.f32.mrb[0].mxu0
    %v1087 = vadd.f32 %v1044, %v1086
    %v1088 = vpop.f32.mrb[0].mxu0
    %v1089 = vadd.f32 %v1046, %v1088
    %v1090 = vpop.f32.mrb[0].mxu0
    %v1091 = vadd.f32 %v1048, %v1090
    %v1092 = vpop.f32.mrb[0].mxu0
    %v1093 = vadd.f32 %v1050, %v1092
    %1094 = vdwg.mxu0
    %1095 = vmatprep.subr.bf16.mxu0 %v628
    %1096 = vmatpush1.bf16.msra.mxu0 %v627
    %1097 = vmatprep.subr.bf16.mxu0 %v634
    %1098 = vmatpush1.bf16.msra.mxu0 %v633
    %1099 = vmatprep.subr.bf16.mxu0 %v640
    %1100 = vmatpush1.bf16.msra.mxu0 %v639
    %1101 = vmatprep.subr.bf16.mxu0 %v646
    %1102 = vmatpush1.bf16.msra.mxu0 %v645
    %1103 = vmatprep.subr.bf16.mxu0 %v652
    %1104 = vmatpush1.bf16.msra.mxu0 %v651
    %1105 = vmatprep.subr.bf16.mxu0 %v658
    %1106 = vmatpush1.bf16.msra.mxu0 %v657
    %1107 = vmatprep.subr.bf16.mxu0 %v664
    %1108 = vmatpush1.bf16.msra.mxu0 %v663
    %1109 = vmatprep.subr.bf16.mxu0 %v670
    %1110 = vmatpush1.bf16.msra.mxu0 %v669
    %1111 = vmatprep.subr.bf16.mxu0 %v676
    %1112 = vmatpush1.bf16.msra.mxu0 %v675
    %1113 = vmatprep.subr.bf16.mxu0 %v682
    %1114 = vmatpush1.bf16.msra.mxu0 %v681
    %1115 = vmatprep.subr.bf16.mxu0 %v688
    %1116 = vmatpush1.bf16.msra.mxu0 %v687
    %1117 = vmatprep.subr.bf16.mxu0 %v694
    %1118 = vmatpush1.bf16.msra.mxu0 %v693
    %1119 = vmatprep.subr.bf16.mxu0 %v700
    %1120 = vmatpush1.bf16.msra.mxu0 %v699
    %1121 = vmatprep.subr.bf16.mxu0 %v706
    %1122 = vmatpush1.bf16.msra.mxu0 %v705
    %1123 = vmatprep.subr.bf16.mxu0 %v712
    %1124 = vmatpush1.bf16.msra.mxu0 %v711
    %1125 = vmatprep.subr.bf16.mxu0 %v718
    %1126 = vmatpush1.bf16.msra.mxu0 %v717
    %1127 = vmatprep.mubr.bf16.mxu0 %v430
    %1128 = vmatmul.mubr.bf16.gmra.mrb[0].mxu0 %v429
    %v1129 = vpop.f32.mrb[0].mxu0
    %v1130 = vadd.f32 %v1087, %v1129
    %v1131 = vpop.f32.mrb[0].mxu0
    %v1132 = vadd.f32 %v1089, %v1131
    %v1133 = vpop.f32.mrb[0].mxu0
    %v1134 = vadd.f32 %v1091, %v1133
    %v1135 = vpop.f32.mrb[0].mxu0
    %v1136 = vadd.f32 %v1093, %v1135
    %1137 = vdwg.mxu0
    %v1138 = vtanh.pop %v872
    %v1139 = vtanh.pop %v874
    %v1140 = vtanh.pop %v1001
    %v1141 = vtanh.pop %v1003
    %v1142 = vtanh.pop %v1130
    %v1143 = vtanh.pop %v1132
    %v1144 = vtanh.pop %v876
    %v1145 = vtanh.pop %v878
    %v1146 = vtanh.pop %v1005
    %v1147 = vtanh.pop %v1007
    %v1148 = vtanh.pop %v1134
    %v1149 = vtanh.pop %v1136
    %v1150 = vld [vmem:[#allocation12] sm:$0x3f]
    %v1152 = vlaneseq
    %v1153 = vshrl.u32 %v1152, 7
    %v1154 = vsub.s32 0, %v1153
    %v1155 = vrot.slane %v1150, %v1154
    %v1156 = vlaneseq
    %v1157 = vshrl.u32 %v1156, 7
    %v1158 = vsub.s32 1, %v1157
    %v1159 = vrot.slane %v1150, %v1158
    %v1160 = vlaneseq
    %v1161 = vshrl.u32 %v1160, 7
    %v1162 = vsub.s32 2, %v1161
    %v1163 = vrot.slane %v1150, %v1162
    %v1164 = vlaneseq
    %v1165 = vshrl.u32 %v1164, 7
    %v1166 = vsub.s32 3, %v1165
    %v1167 = vrot.slane %v1150, %v1166
    %v1168 = vlaneseq
    %v1169 = vshrl.u32 %v1168, 7
    %v1170 = vsub.s32 4, %v1169
    %v1171 = vrot.slane %v1150, %v1170
    %v1172 = vlaneseq
    %v1173 = vshrl.u32 %v1172, 7
    %v1174 = vsub.s32 5, %v1173
    %v1175 = vrot.slane %v1150, %v1174
    %v1182 = vmul.f32 %v1138, %v1155
    %v1183 = vmul.f32 %v1139, %v1159
    %v1184 = vmul.f32 %v1140, %v1163
    %v1185 = vmul.f32 %v1141, %v1167
    %v1186 = vmul.f32 %v1142, %v1171
    %v1187 = vmul.f32 %v1143, %v1175
    %v1188 = vmul.f32 %v1144, %v1155
    %v1189 = vmul.f32 %v1145, %v1159
    %v1190 = vmul.f32 %v1146, %v1163
    %v1191 = vmul.f32 %v1147, %v1167
    %v1192 = vmul.f32 %v1148, %v1171
    %v1193 = vmul.f32 %v1149, %v1175
    %v1194 = vadd.f32 %v1182, %v1183
    %v1195 = vadd.f32 %v1194, %v1184
    %v1196 = vadd.f32 %v1195, %v1185
    %v1197 = vadd.f32 %v1196, %v1186
    %v1198 = vadd.f32 %v1197, %v1187
    %1199 = vadd.xlane.f32.xlu0 %v1198
    %v1200 = vpop.xlane.xlu0 %1199
    %v1201 = vadd.f32 %v1188, %v1189
    %v1202 = vadd.f32 %v1201, %v1190
    %v1203 = vadd.f32 %v1202, %v1191
    %v1204 = vadd.f32 %v1203, %v1192
    %v1205 = vadd.f32 %v1204, %v1193
    %1206 = vadd.xlane.f32.xlu0 %v1205
    %v1207 = vpop.xlane.xlu0 %1206
    %s1208 = sld [smem:[#allocation6]]
    %v1209 = vstv %s1208
    %v1210 = vadd.f32 %v1200, %v1209
    %v1211 = vadd.f32 %v1207, %v1209
    %v1213 = vrot.slane %v1210, 4
    %v1216 = vrot.slane %v1211, 4
    %vm1218 = vcmask 7168
    %v1219 = vsel %vm1218, %v1210, %v1213
    %vm1220 = vcmask 15360
    %v1221 = vsel %vm1220, %v1219, %v1211
    %vm1222 = vcmask 23552
    %v1223 = vsel %vm1222, %v1221, %v1216
    %vm1224 = vcmask 27648
    %1225 = vst.msk [vmem:[#allocation18] sm:$0xf] %vm1224, %v1223
    %1227 = vset.pattern.permute.xlu0 0
    %1228 = vperm.xlu0 %1227, %v1223
    %v1229 = vpop.permute.xlu0 %1228
    %v1231 = vsub.f32 %v1229, %v1223
    %v1232 = vld [vmem:[#allocation14] sm:$0xf]
    %1234 = vrot.lane.b32.xlu0 %v1232, 1
    %v1235 = vpop.permute.xlu0 %1234
    %v1237 = vmul.f32 %v1231, %v1235
    %v1238 = vsub.f32 1.0, %v1237
    %v1239 = vmax.f32 %v1238, 0.0
    %1241 = vrot.lane.b32.xlu0 %v1239, 127
    %v1242 = vpop.permute.xlu0 %1241
    %vm1244 = vcmask 19456
    %v1245 = vsel %vm1244, %v1242, 0.0
    %1246 = vadd.xlane.f32.xlu0 %v1245
    %v1247 = vpop.xlane.xlu0 %1246
    %v1248 = vrot.slane %v1247, 4
    %v1249 = vadd.f32 %v1247, %v1248
    %v1250 = vrot.slane %v1249, 2
    %v1251 = vadd.f32 %v1249, %v1250
    %v1252 = vrot.slane %v1251, 1
    %v1253 = vadd.f32 %v1251, %v1252
    %s1254 = vtos %v1253
    %v1255 = vrcp.pop 12.0
    %s1256 = vtos %v1255
    %s1257 = smul.f32 %s1254, %s1256
    %s1258 = sld [smem:[#allocation17]]
    %s1259 = smul.f32 %s1258, 2.0
    %v1260 = vstv %s1259
    %v1261 = vrcp.pop %v1260
    %s1262 = vtos %v1261
    %s1263 = smul.f32 %s1257, %s1262
    %s1264 = sadd.f32 %s1258, 1.0
    %v1265 = vstv %s1264
    %v1266 = vlog2.pop %v1265
    %v1267 = vmul.f32 %v1266, 0.6931472
    %s1268 = vtos %v1267
    %s1269 = sadd.f32 %s1263, %s1268
    %v1270 = vstv %s1269
    %vm1271 = vcmask 0
    %1272 = vst.msk [vmem:[#allocation21] sm:$0x1] %vm1271, %v1270
    %s1273 = sld [smem:[#allocation17 + $0x1]]
    %s1274 = sld [smem:[#allocation17 + $0x2]]
    %s1275 = sld [smem:[#allocation17 + $0x3]]
    %s1276 = sadd.f32 %s1273, 1.0
    %v1277 = vstv %s1276
    %v1278 = vlog2.pop %v1277
    %v1279 = vmul.f32 %v1278, 0.6931472
    %s1280 = vtos %v1279
    %s1281 = sadd.f32 %s1274, 1.0
    %v1282 = vstv %s1281
    %v1283 = vlog2.pop %v1282
    %v1284 = vmul.f32 %v1283, 0.6931472
    %s1285 = vtos %v1284
    %s1286 = sadd.f32 %s1275, 1.0
    %v1287 = vstv %s1286
    %v1288 = vlog2.pop %v1287
    %v1289 = vmul.f32 %v1288, 0.6931472
    %s1290 = vtos %v1289
    %s1291 = sld [smem:[#allocation15]]
    %s1292 = smul.f32 %s1273, 2.0
    %v1293 = vstv %s1292
    %v1294 = vrcp.pop %v1293
    %s1295 = vtos %v1294
    %s1296 = smul.f32 %s1291, %s1295
    %s1297 = sadd.f32 %s1296, %s1280
    %s1298 = sld [smem:[#allocation15 + $0x1]]
    %s1299 = smul.f32 %s1274, 2.0
    %v1300 = vstv %s1299
    %v1301 = vrcp.pop %v1300
    %s1302 = vtos %v1301
    %s1303 = smul.f32 %s1298, %s1302
    %s1304 = sadd.f32 %s1297, %s1303
    %s1305 = sadd.f32 %s1304, %s1285
    %s1306 = sld [smem:[#allocation15 + $0x2]]
    %s1307 = smul.f32 %s1275, 2.0
    %v1308 = vstv %s1307
    %v1309 = vrcp.pop %v1308
    %s1310 = vtos %v1309
    %s1311 = smul.f32 %s1306, %s1310
    %s1312 = sadd.f32 %s1305, %s1311
    %s1313 = sadd.f32 %s1312, %s1290
    %s1314 = sadd.f32 %s1313, 0.0
    %s1315 = sld [smem:[#allocation15 + $0x3]]
    %v1316 = vstv %s1292
    %v1317 = vrcp.pop %v1316
    %s1318 = vtos %v1317
    %s1319 = smul.f32 %s1315, %s1318
    %s1320 = sadd.f32 %s1319, %s1280
    %s1321 = sld [smem:[#allocation15 + $0x4]]
    %v1322 = vstv %s1299
    %v1323 = vrcp.pop %v1322
    %s1324 = vtos %v1323
    %s1325 = smul.f32 %s1321, %s1324
    %s1326 = sadd.f32 %s1320, %s1325
    %s1327 = sadd.f32 %s1326, %s1285
    %s1328 = sld [smem:[#allocation15 + $0x5]]
    %v1329 = vstv %s1307
    %v1330 = vrcp.pop %v1329
    %s1331 = vtos %v1330
    %s1332 = smul.f32 %s1328, %s1331
    %s1333 = sadd.f32 %s1327, %s1332
    %s1334 = sadd.f32 %s1333, %s1290
    %s1335 = sadd.f32 %s1314, %s1334
    %s1336 = sld [smem:[#allocation15 + $0x6]]
    %v1337 = vstv %s1292
    %v1338 = vrcp.pop %v1337
    %s1339 = vtos %v1338
    %s1340 = smul.f32 %s1336, %s1339
    %s1341 = sadd.f32 %s1340, %s1280
    %s1342 = sld [smem:[#allocation15 + $0x7]]
    %v1343 = vstv %s1299
    %v1344 = vrcp.pop %v1343
    %s1345 = vtos %v1344
    %s1346 = smul.f32 %s1342, %s1345
    %s1347 = sadd.f32 %s1341, %s1346
    %s1348 = sadd.f32 %s1347, %s1285
    %s1349 = sld [smem:[#allocation15 + $0x8]]
    %v1350 = vstv %s1307
    %v1351 = vrcp.pop %v1350
    %s1352 = vtos %v1351
    %s1353 = smul.f32 %s1349, %s1352
    %s1354 = sadd.f32 %s1348, %s1353
    %s1355 = sadd.f32 %s1354, %s1290
    %s1356 = sadd.f32 %s1335, %s1355
    %s1357 = sld [smem:[#allocation15 + $0x9]]
    %v1358 = vstv %s1292
    %v1359 = vrcp.pop %v1358
    %s1360 = vtos %v1359
    %s1361 = smul.f32 %s1357, %s1360
    %s1362 = sadd.f32 %s1361, %s1280
    %s1363 = sld [smem:[#allocation15 + $0xa]]
    %v1364 = vstv %s1299
    %v1365 = vrcp.pop %v1364
    %s1366 = vtos %v1365
    %s1367 = smul.f32 %s1363, %s1366
    %s1368 = sadd.f32 %s1362, %s1367
    %s1369 = sadd.f32 %s1368, %s1285
    %s1370 = sld [smem:[#allocation15 + $0xb]]
    %v1371 = vstv %s1307
    %v1372 = vrcp.pop %v1371
    %s1373 = vtos %v1372
    %s1374 = smul.f32 %s1370, %s1373
    %s1375 = sadd.f32 %s1369, %s1374
    %s1376 = sadd.f32 %s1375, %s1290
    %s1377 = sadd.f32 %s1356, %s1376
    %v1378 = vrcp.pop 4.0
    %s1379 = vtos %v1378
    %s1380 = smul.f32 %s1377, %s1379
    %v1381 = vstv %s1380
    %1382 = vst.msk [vmem:[#allocation19] sm:$0x1] %vm1271, %v1381
    // Predicated region
    $region58: #{tpu_custom_call.1} parent=1 // pred_check
      _
    $region59: #{tpu_custom_call.1} parent=1 // pred_check_branch
      %1384 = sbr.rel (0) target = $region61
    $region60: #{tpu_custom_call.1} parent=1 // pred_region
      %s1386 = ssub.s32 64, 64
      %1387 = vsyncadd [#allocation9], %s1386
      %s1389 = sshll.u32 [#allocation18], 4
      %s1390 = int_to_ptr.vmem [resolvable:$true] %s1389
      %1392 = dma.vmem_to_hbm [thread:$0]  %s1390, 64, %s9, [#allocation9]
    $region61: #{tpu_custom_call.1} parent=1 // pred_fallthru
      _
    // Predicated region
    $region62: #{tpu_custom_call.1} parent=1 // pred_check
      _
    $region63: #{tpu_custom_call.1} parent=1 // pred_check_branch
      %1394 = sbr.rel (0) target = $region65
    $region64: #{tpu_custom_call.1} parent=1 // pred_region
      %s1396 = ssub.s32 16, 16
      %1397 = vsyncadd [#allocation20], %s1396
      %s1399 = sshll.u32 [#allocation19], 4
      %s1400 = int_to_ptr.vmem [resolvable:$true] %s1399
      %1402 = dma.vmem_to_hbm [thread:$0]  %s1400, 16, %s10, [#allocation20]
    $region65: #{tpu_custom_call.1} parent=1 // pred_fallthru
      _
    // Predicated region
    $region66: #{tpu_custom_call.1} parent=1 // pred_check
      _
    $region67: #{tpu_custom_call.1} parent=1 // pred_check_branch
      %1404 = sbr.rel (0) target = $region69
    $region68: #{tpu_custom_call.1} parent=1 // pred_region
      %s1406 = ssub.s32 16, 16
      %1407 = vsyncadd [#allocation20], %s1406
      %s1409 = sshll.u32 [#allocation21], 4
      %s1410 = int_to_ptr.vmem [resolvable:$true] %s1409
      %1412 = dma.vmem_to_hbm [thread:$0]  %s1410, 16, %s11, [#allocation20]
    $region69: #{tpu_custom_call.1} parent=1 // pred_fallthru
      _
    // Predicated region
    $region70: #{tpu_custom_call.1} parent=1 // pred_check
      _
    $region71: #{tpu_custom_call.1} parent=1 // pred_check_branch
      %1414 = sbr.rel (0) target = $region73
    $region72: #{tpu_custom_call.1} parent=1 // pred_region
      %1415 = dma.done [#allocation9], 64
    $region73: #{tpu_custom_call.1} parent=1 // pred_fallthru
      _
    // Predicated region
    $region74: #{tpu_custom_call.1} parent=1 // pred_check
      _
    $region75: #{tpu_custom_call.1} parent=1 // pred_check_branch
      %1417 = sbr.rel (0) target = $region77
    $region76: #{tpu_custom_call.1} parent=1 // pred_region
      %1418 = dma.done [#allocation20], 16
    $region77: #{tpu_custom_call.1} parent=1 // pred_fallthru
      _
    // Predicated region
    $region78: #{tpu_custom_call.1} parent=1 // pred_check
      _
    $region79: #{tpu_custom_call.1} parent=1 // pred_check_branch
      %1420 = sbr.rel (0) target = $region81
    $region80: #{tpu_custom_call.1} parent=1 // pred_region
      %1421 = dma.done [#allocation20], 16
    $region81: #{tpu_custom_call.1} parent=1 // pred_fallthru
      _
    %1422 = vsyncpa [#allocation8], 1
    %1423 = vsyncpa [#allocation13], 1
    %1424 = vsyncpa [#allocation9], 1
    %1425 = vsyncpa [#allocation20], 1
    %1426 = vsyncpa [#allocation10], 1
    %1427 = vsyncpa [#allocation16], 1
  %1428 = vsyncmov [#allocation5]
  %s1429 = vpop.sfrf %1428
  %p1430 = scmp.eq.s32.totalorder %s1429, 0
  %p1431 = pneg %p1430
  %1433 = shalt.err (%p1431)
  %s1434 = scalar_lea.sflag [#allocation5], 1
  %1435 = vsyncmov %s1434
  %s1436 = vpop.sfrf %1435
  %p1437 = scmp.eq.s32.totalorder %s1436, 0
  %p1438 = pneg %p1437
  %1440 = shalt.err (%p1438)

</llo_original>
